<compile_context>
chip_gen: v6e
topology: v6e:2x2x1
jax: 0.10.0
libtpu: 0.0.40
codegen_flags: <defaults>
</compile_context>

<pallas_src>
import functools

import jax
import jax.numpy as jnp
import numpy as np
from jax import lax
from jax.experimental import pallas as pl
from jax.experimental.pallas import tpu as pltpu


def _round_up(x, m):
    return (x + m - 1) // m * m


def _signal_prop_kernel(sig_ref, w_state_ref, w_sig_ref, out_ref, x_ref,
                        *, resp_cols):
    """One grid step == K time steps of the recurrence, as two small matmuls."""
    t = pl.program_id(0)

    # Zero the carried state [s', col, row] once, before the first chunk.
    @pl.when(t == 0)
    def _():
        x_ref[...] = jnp.zeros_like(x_ref)

    x = x_ref[...]                       # (1, 3n)  carry entering this chunk
    g = sig_ref[...][0]                  # (1, K)   this chunk's signal samples

    # Fused response + carry tables: one (1,3n) and one (1,K) MXU matmul.
    r = (jnp.dot(x, w_state_ref[...], preferred_element_type=jnp.float32)
         + jnp.dot(g, w_sig_ref[...], preferred_element_type=jnp.float32))

    # First K*n columns: the K response rows, flattened time-major (m*n + c).
    out_ref[...] = r[:, :resp_cols].reshape(1, 1, resp_cols)
    # Last 3n columns: the carry entering the next chunk.
    x_ref[...] = r[:, resp_cols:]


def _build_block_operators(A, momentum, K):
    """Precompute the blocked-recurrence operator tables (f32, plain XLA)."""
    A = jnp.asarray(A, jnp.float32)
    n = A.shape[0]
    a = jnp.float32(momentum)

    N = jnp.transpose(A / (jnp.sum(A, axis=0, keepdims=True) + 1e-32))   # (n, n)
    r = jnp.sum(N, axis=1)                    # row sums of N
    c = jnp.sum(N, axis=0)                    # column sums of N (= 1 @ N)
    eye = jnp.eye(n, dtype=jnp.float32)

    # Row-vector convention: x_{i+1} = x_i @ T + sig_i * u,  x = [s', col, row].
    T = jnp.zeros((3 * n, 3 * n), jnp.float32)
    T = T.at[0:n, 0:n].set(eye + N - jnp.diag(r))
    T = T.at[0:n, n:2 * n].set(N)
    T = T.at[0:n, 2 * n:3 * n].set(jnp.diag(r))
    T = T.at[n:2 * n, 0:n].set(a * eye)
    T = T.at[n:2 * n, n:2 * n].set(a * eye)
    T = T.at[2 * n:3 * n, 0:n].set(-a * eye)
    T = T.at[2 * n:3 * n, 2 * n:3 * n].set(a * eye)
    u = jnp.concatenate([1.0 + c - r, c, r]).astype(jnp.float32)          # (3n,)

    # T^m for m = 0..K and u @ T^m (keep K <= 128 so f32 power error stays tiny).
    def pow_step(Tm, _):
        return jnp.dot(Tm, T, preferred_element_type=jnp.float32), Tm
    _, T_pows = lax.scan(pow_step, jnp.eye(3 * n, dtype=jnp.float32),
                         None, length=K + 1)                 # T_pows[m] = T^m
    uT = jnp.einsum('q,mqk->mk', u, T_pows)                  # uT[d] = u @ T^d

    # Response table: resp[m, c] = x @ D_state[:, m*n+c] + sig_blk @ D_sig[:, m*n+c]
    D_state = jnp.transpose(T_pows[:K, :, :n], (1, 0, 2)).reshape(3 * n, K * n)
    uTn = uT[:, :n]                                           # (K+1, n)
    jj = jnp.arange(K)[:, None]                               # in-block sig index
    mm = jnp.arange(K)[None, :]                               # in-block output step
    d = mm - 1 - jj                                           # delay through state
    vals = uTn[jnp.clip(d, 0, K)]                             # (K, K, n)
    vals = jnp.where((d >= 0)[..., None], vals, 0.0)
    vals = vals + jnp.where((jj == mm)[..., None], jnp.float32(1.0), 0.0)
    D_sig = vals.reshape(K, K * n)

    # Carry table: x_next = x @ C_state + sig_blk @ C_sig
    C_state = T_pows[K]                                       # T^K
    C_sig = uT[K - 1::-1]                                     # C_sig[j] = u T^{K-1-j}

    # Fuse so the kernel issues only 2 matmuls per chunk.
    W_state = jnp.concatenate([D_state, C_state], axis=1)     # (3n, K*n + 3n)
    W_sig = jnp.concatenate([D_sig, C_sig], axis=1)           # (K,  K*n + 3n)
    return W_state, W_sig


def signal_propagation(A, sig, *, momentum=0.999, response_len=10000,
                       block_steps=128):
    """Pallas TPU implementation of SignalPropagation.forward(A) -> (n, response_len)."""
    A = jnp.asarray(A, jnp.float32)
    sig = jnp.asarray(sig, jnp.float32)
    n = A.shape[0]
    sig_loop = sig.shape[0]
    # The module indexes sig with  i % (len(sig) - 1)  -> needs len(sig) >= 2.
    assert sig_loop >= 2, "SignalPropagation requires len(sig) >= 2"

    # Time steps per grid iteration (reviewer: keep K <= 128 for f32 accuracy).
    K = int(block_steps)
    K = min(K, _round_up(max(int(response_len), 1), 8))
    K = max(8, _round_up(K, 8))
    padded_len = _round_up(max(int(response_len), 1), K)
    num_chunks = padded_len // K
    three_n = 3 * n
    resp_cols = K * n                                         # lane-dense output

    W_state, W_sig = _build_block_operators(A, momentum, K)

    # Pre-tile the signal: removes the per-step modulo and keeps only a (1,1,K)
    # block per chunk on-chip (instead of the whole signal in SMEM).
    idx = jnp.arange(padded_len, dtype=jnp.int32) % (sig_loop - 1)
    sig_tiled = sig[idx].reshape(num_chunks, 1, K)

    kernel = functools.partial(_signal_prop_kernel, resp_cols=resp_cols)

    out = pl.pallas_call(
        kernel,
        out_shape=jax.ShapeDtypeStruct((num_chunks, 1, resp_cols), jnp.float32),
        grid=(num_chunks,),
        in_specs=[
            pl.BlockSpec((1, 1, K), lambda t: (t, 0, 0)),          # signal chunk
            pl.BlockSpec((three_n, resp_cols + three_n),           # W_state,
                         lambda t: (0, 0)),                        # resident
            pl.BlockSpec((K, resp_cols + three_n),                 # W_sig,
                         lambda t: (0, 0)),                        # resident
        ],
        out_specs=pl.BlockSpec((1, 1, resp_cols), lambda t: (t, 0, 0)),
        scratch_shapes=[
            pltpu.VMEM((1, three_n), jnp.float32),   # x = [s', col, row] carry
        ],
        # Strictly serial recurrence across chunks (carry in scratch).
        # NOTE: for large n on v7x, cap K so 2 * 4 * K * (K*n + 3n) bytes of
        # resident tables stay inside the 32 MiB scoped VMEM default (or raise
        # vmem_limit_bytes); at n=16 the footprint is ~3 MiB.
        compiler_params=pltpu.CompilerParams(
            dimension_semantics=("arbitrary",)),
    )(sig_tiled, W_state, W_sig)

    # (num_chunks, 1, K*n) -> (padded_len, n) -> (n, response_len)
    # (matches torch.stack(response).squeeze().T; padded tail steps dropped).
    resp = out.reshape(padded_len, n)[:response_len]
    return jnp.transpose(resp)


def signal_propagation_ref(A, sig, *, momentum=0.999, response_len=100):
    """NumPy reference mirroring the PyTorch loop exactly (matrix form)."""
    A = np.asarray(A, np.float32)
    sig = np.asarray(sig, np.float32)
    n = A.shape[0]
    L = sig.shape[0]
    N = (A / (A.sum(axis=0) + 1e-32)).T.astype(np.float32)
    s = np.zeros((1, n), np.float32)
    M = np.zeros((n, n), np.float32)
    rows = []
    for i in range(response_len):
        s = s + sig[i % (L - 1)]
        rows.append(s)
        dS = s.T * N + momentum * M
        s = s + dS.sum(axis=0, keepdims=True) - dS.sum(axis=1, keepdims=True).T
        M = dS
    return np.concatenate(rows, axis=0).T.astype(np.float32)


def _check(out, ref, tol):
    out = np.asarray(out)
    scale = np.max(np.abs(ref)) + 1e-30
    err = np.max(np.abs(out - ref)) / scale
    assert err < tol, f"max relative error {err} >= {tol}"


if __name__ == "__main__":
    # TODO(synk): the module's `tqdm` progress callback has no kernel
    # equivalent (it is a no-op lambda by default and does not affect the math).
    key = jax.random.PRNGKey(0)
    k_a, k_s = jax.random.split(key)

    n = 16              # graph size (len(A))
    sig_loop = 8        # len(sig)
    momentum = 0.999

    A = jax.random.uniform(k_a, (n, n), dtype=jnp.float32)        # adjacency
    sig = jax.random.normal(k_s, (sig_loop,), dtype=jnp.float32)  # signal

    # Case 1: single chunk (response_len <= block_steps).
    response_len = 100
    out = signal_propagation(A, sig, momentum=momentum,
                             response_len=response_len)
    out = jax.block_until_ready(out)
    assert out.shape == (n, response_len), out.shape
    ref = signal_propagation_ref(np.asarray(A), np.asarray(sig),
                                 momentum=momentum, response_len=response_len)
    _check(out, ref, 2e-3)

    # Case 2: several chunks -> exercises the cross-chunk carried state.
    response_len = 300
    out = signal_propagation(A, sig, momentum=momentum,
                             response_len=response_len)
    out = jax.block_until_ready(out)
    assert out.shape == (n, response_len), out.shape
    ref = signal_propagation_ref(np.asarray(A), np.asarray(sig),
                                 momentum=momentum, response_len=response_len)
    _check(out, ref, 3e-3)

    # Case 3: the module's default length, to exercise the kernel at scale
    # (reference already validated above on shorter runs).
    out = signal_propagation(A, sig, momentum=momentum, response_len=10000)
    out = jax.block_until_ready(out)
    assert out.shape == (n, 10000), out.shape

    print("KERNEL_OK")
</pallas_src>

<mosaic_0001>
module attributes {stable_mosaic.version = 11 : i64} {
  func.func @_signal_prop_kernel(%arg0: i32, %arg1: memref<1x1x104xf32, #tpu.memory_space<vmem>>, %arg2: memref<48x1712xf32, #tpu.memory_space<vmem>>, %arg3: memref<104x1712xf32, #tpu.memory_space<vmem>>, %arg4: memref<1x1x1664xf32, #tpu.memory_space<vmem>>, %arg5: memref<1x48xf32, #tpu.memory_space<vmem>>) attributes {dimension_semantics = [#tpu.dimension_semantics<arbitrary>], iteration_bounds = array<i64: 1>, scalar_prefetch = 0 : i64, scratch_operands = 1 : i64, tpu.core_type = #tpu.core_type<tc>, window_params = [{transform_indices = @transform_0, window_bounds = array<i64: 1, 1, 104>}, {pipeline_mode = #tpu.pipeline_mode<synchronous>, transform_indices = @transform_1, window_bounds = array<i64: 48, 1712>}, {pipeline_mode = #tpu.pipeline_mode<synchronous>, transform_indices = @transform_2, window_bounds = array<i64: 104, 1712>}, {transform_indices = @transform_3, window_bounds = array<i64: 1, 1, 1664>}]} {
    %c0_i32 = arith.constant 0 : i32
    %0 = arith.cmpi eq, %arg0, %c0_i32 : i32
    %1 = arith.extui %0 : i1 to i32
    %c0_i32_0 = arith.constant 0 : i32
    %2 = arith.cmpi ne, %1, %c0_i32_0 : i32
    scf.if %2 {
      %cst_15 = arith.constant 0.000000e+00 : f32
      %16 = vector.broadcast %cst_15 : f32 to vector<1x48xf32>
      %c0_16 = arith.constant 0 : index
      %c0_17 = arith.constant 0 : index
      %17 = vector.load %arg5[%c0_16, %c0_17] : memref<1x48xf32, #tpu.memory_space<vmem>>, vector<1x48xf32>
      tpu.vector_store %arg5[%c0_16, %c0_17], %16 {strides = array<i32>} : memref<1x48xf32, #tpu.memory_space<vmem>>, vector<1x48xf32>,
    } else {
    }
    %c0 = arith.constant 0 : index
    %c0_1 = arith.constant 0 : index
    %3 = vector.load %arg5[%c0, %c0_1] : memref<1x48xf32, #tpu.memory_space<vmem>>, vector<1x48xf32>
    %c0_2 = arith.constant 0 : index
    %c0_3 = arith.constant 0 : index
    %c0_4 = arith.constant 0 : index
    %4 = vector.load %arg1[%c0_2, %c0_3, %c0_4] : memref<1x1x104xf32, #tpu.memory_space<vmem>>, vector<1x1x104xf32>
    %5 = vector.shape_cast %4 : vector<1x1x104xf32> to vector<1x104xf32>
    %c0_5 = arith.constant 0 : index
    %c0_6 = arith.constant 0 : index
    %6 = vector.load %arg2[%c0_5, %c0_6] : memref<48x1712xf32, #tpu.memory_space<vmem>>, vector<48x1712xf32>
    %cst = arith.constant dense<0.000000e+00> : vector<1x1712xf32>
    %7 = tpu.matmul %3, %6, %cst {dimension_numbers = #tpu.dot_dimension_numbers<[1], [0], [0], [1], [0, 0, 1, 1], [], []>} : vector<1x48xf32>, vector<48x1712xf32>, vector<1x1712xf32> -> vector<1x1712xf32>
    %c0_7 = arith.constant 0 : index
    %c0_8 = arith.constant 0 : index
    %8 = vector.load %arg3[%c0_7, %c0_8] : memref<104x1712xf32, #tpu.memory_space<vmem>>, vector<104x1712xf32>
    %cst_9 = arith.constant dense<0.000000e+00> : vector<1x1712xf32>
    %9 = tpu.matmul %5, %8, %cst_9 {dimension_numbers = #tpu.dot_dimension_numbers<[1], [0], [0], [1], [0, 0, 1, 1], [], []>} : vector<1x104xf32>, vector<104x1712xf32>, vector<1x1712xf32> -> vector<1x1712xf32>
    %10 = arith.addf %7, %9 : vector<1x1712xf32>
    %11 = vector.extract_strided_slice %10 {offsets = [0, 0], sizes = [1, 1664], strides = [1, 1]} : vector<1x1712xf32> to vector<1x1664xf32>
    %12 = vector.shape_cast %11 : vector<1x1664xf32> to vector<1x1x1664xf32>
    %c0_10 = arith.constant 0 : index
    %c0_11 = arith.constant 0 : index
    %c0_12 = arith.constant 0 : index
    %13 = vector.load %arg4[%c0_10, %c0_11, %c0_12] : memref<1x1x1664xf32, #tpu.memory_space<vmem>>, vector<1x1x1664xf32>
    tpu.vector_store %arg4[%c0_10, %c0_11, %c0_12], %12 {strides = array<i32>} : memref<1x1x1664xf32, #tpu.memory_space<vmem>>, vector<1x1x1664xf32>,
    %14 = vector.extract_strided_slice %10 {offsets = [0, 1664], sizes = [1, 48], strides = [1, 1]} : vector<1x1712xf32> to vector<1x48xf32>
    %c0_13 = arith.constant 0 : index
    %c0_14 = arith.constant 0 : index
    %15 = vector.load %arg5[%c0_13, %c0_14] : memref<1x48xf32, #tpu.memory_space<vmem>>, vector<1x48xf32>
    tpu.vector_store %arg5[%c0_13, %c0_14], %14 {strides = array<i32>} : memref<1x48xf32, #tpu.memory_space<vmem>>, vector<1x48xf32>,
    return
  }
  func.func @transform_0(%arg0: i32) -> (i32, i32, i32) {
    %c0_i32 = arith.constant 0 : i32
    %c0_i32_0 = arith.constant 0 : i32
    %c0_i32_1 = arith.constant 0 : i32
    return %arg0, %c0_i32, %c0_i32_0 : i32, i32, i32
  }
  func.func @transform_1(%arg0: i32) -> (i32, i32) {
    %c0_i32 = arith.constant 0 : i32
    %c0_i32_0 = arith.constant 0 : i32
    %c0_i32_1 = arith.constant 0 : i32
    return %c0_i32, %c0_i32_0 : i32, i32
  }
  func.func @transform_2(%arg0: i32) -> (i32, i32) {
    %c0_i32 = arith.constant 0 : i32
    %c0_i32_0 = arith.constant 0 : i32
    %c0_i32_1 = arith.constant 0 : i32
    return %c0_i32, %c0_i32_0 : i32, i32
  }
  func.func @transform_3(%arg0: i32) -> (i32, i32, i32) {
    %c0_i32 = arith.constant 0 : i32
    %c0_i32_0 = arith.constant 0 : i32
    %c0_i32_1 = arith.constant 0 : i32
    return %arg0, %c0_i32, %c0_i32_0 : i32, i32, i32
  }
}

</mosaic_0001>

<llo_original>
// kernel: tpu_custom_call.1
$region0: #{tpu_custom_call.1}
  #allocation0 [shape = 'u32[]', space=smem, size = 0x4, offset = 0x4, fixed_abs, tag = 'smem constant byte address 0x4 - core index']
  #allocation1 [shape = 'u32[144,128]{1,0:T(1,128)}', space=vmem, size = 0x12000, scoped, tag = 'internal scratch']
  #allocation2 [shape = 'f32[1,48]{1,0:T(1,128)}', space=vmem, size = 0x200, scoped, tag = 'scratch operand']
  %s0 = inlined_call_operand.hbm [shape: f32[1,1,104], index: 0, kind: input, shape index: {}]
  %s1 = inlined_call_operand.hbm [shape: f32[48,1712], index: 1, kind: input, shape index: {}]
  %s2 = inlined_call_operand.hbm [shape: f32[104,1712], index: 2, kind: input, shape index: {}]
  %s3 = inlined_call_operand.hbm [shape: f32[1,1,1664], index: 3, kind: output, shape index: {}]
  %s4 = sld [smem:[#allocation0]]
  $region38: #{tpu_custom_call.1} parent=0
    _
  %s6 = ssub.s32 1, %s4
  %s7 = scalar_select 0, %s6, %s4
  $region1: #{tpu_custom_call.1} parent=0
    #allocation3 [shape = 'u8[512]{0}', space=vmem, size = 0x400, scoped, tag = 'input window, operand 0, single buffered']
    #allocation4 [shape = 's32[1]{0}', space=sflag, size = 0x4, scoped, tag = 'scoped memory for tpu_custom_call.1']
    #allocation5 [shape = 's32[1]{0}', space=sflag, size = 0x4, scoped, tag = 'scoped memory for tpu_custom_call.1']
    #allocation6 [shape = 'u8[344064]{0}', space=vmem, size = 0x54000, scoped, tag = 'input window, operand 1, single buffered']
    #allocation7 [shape = 's32[1]{0}', space=sflag, size = 0x4, scoped, tag = 'scoped memory for tpu_custom_call.1']
    #allocation8 [shape = 'u8[745472]{0}', space=vmem, size = 0xb6000, scoped, tag = 'input window, operand 2, single buffered']
    #allocation9 [shape = 'u8[6656]{0}', space=vmem, size = 0x1c00, scoped, tag = 'output window, operand 0, single buffered']
    %8 = vsyncpa [#allocation4], 0
    %9 = vsyncpa [#allocation7], 0
    %10 = vsyncpa [#allocation5], 0
    // Predicated region
    $region2: #{tpu_custom_call.1} parent=1 // pred_check
      _
    $region3: #{tpu_custom_call.1} parent=1 // pred_check_branch
      %12 = sbr.rel (0) target = $region5
    $region4: #{tpu_custom_call.1} parent=1 // pred_region
      %s14 = ssub.s32 16, 16
      %15 = vsyncadd [#allocation4], %s14
      %s17 = sshll.u32 [#allocation3], 4
      %s18 = int_to_ptr.vmem [resolvable:$true] %s17
      %20 = dma.hbm_to_vmem [thread:$0]  %s0, 16, %s18, [#allocation4]
    $region5: #{tpu_custom_call.1} parent=1 // pred_fallthru
      _
    // Predicated region
    $region6: #{tpu_custom_call.1} parent=1 // pred_check
      _
    $region7: #{tpu_custom_call.1} parent=1 // pred_check_branch
      %22 = sbr.rel (0) target = $region9
    $region8: #{tpu_custom_call.1} parent=1 // pred_region
      %s24 = ssub.s32 10752, 10752
      %25 = vsyncadd [#allocation7], %s24
      %s26 = sshll.u32 [#allocation6], 4
      %s27 = int_to_ptr.vmem [resolvable:$true] %s26
      %32 = dma.hbm_to_vmem [thread:$0]  %s1, 10752, %s27, [#allocation7], 1792, 1792, 112
    $region9: #{tpu_custom_call.1} parent=1 // pred_fallthru
      _
    // Predicated region
    $region10: #{tpu_custom_call.1} parent=1 // pred_check
      _
    $region11: #{tpu_custom_call.1} parent=1 // pred_check_branch
      %34 = sbr.rel (0) target = $region13
    $region12: #{tpu_custom_call.1} parent=1 // pred_region
      %s36 = ssub.s32 23296, 23296
      %37 = vsyncadd [#allocation7], %s36
      %s38 = sshll.u32 [#allocation8], 4
      %s39 = int_to_ptr.vmem [resolvable:$true] %s38
      %44 = dma.hbm_to_vmem [thread:$0]  %s2, 23296, %s39, [#allocation7], 1792, 1792, 112
    $region13: #{tpu_custom_call.1} parent=1 // pred_fallthru
      _
    // Predicated region
    $region14: #{tpu_custom_call.1} parent=1 // pred_check
      _
    $region15: #{tpu_custom_call.1} parent=1 // pred_check_branch
      %46 = sbr.rel (0) target = $region17
    $region16: #{tpu_custom_call.1} parent=1 // pred_region
      %47 = dma.done [#allocation4], 16
    $region17: #{tpu_custom_call.1} parent=1 // pred_fallthru
      _
    // Predicated region
    $region18: #{tpu_custom_call.1} parent=1 // pred_check
      _
    $region19: #{tpu_custom_call.1} parent=1 // pred_check_branch
      %49 = sbr.rel (0) target = $region21
    $region20: #{tpu_custom_call.1} parent=1 // pred_region
      %50 = dma.done [#allocation7], 10752
    $region21: #{tpu_custom_call.1} parent=1 // pred_fallthru
      _
    // Predicated region
    $region22: #{tpu_custom_call.1} parent=1 // pred_check
      _
    $region23: #{tpu_custom_call.1} parent=1 // pred_check_branch
      %52 = sbr.rel (0) target = $region25
    $region24: #{tpu_custom_call.1} parent=1 // pred_region
      %53 = dma.done [#allocation7], 23296
    $region25: #{tpu_custom_call.1} parent=1 // pred_fallthru
      _
    %p54 = scmp.eq.s32.totalorder 0, 0
    // Predicated region
    $region26: #{tpu_custom_call.1} parent=1 // pred_check
      %p55 = pneg %p54
    $region27: #{tpu_custom_call.1} parent=1 // pred_check_branch
      %57 = sbr.rel (%p55) target = $region29
    $region28: #{tpu_custom_call.1} parent=1 // pred_region
      %vm58 = vcmask 385024
      %59 = vst.msk [vmem:[#allocation2] sm:$0x1] %vm58, 0.0
    $region29: #{tpu_custom_call.1} parent=1 // pred_fallthru
      _
    %v60 = vld [vmem:[#allocation2] sm:$0x1]
    %v61 = vld [vmem:[#allocation3] sm:$0x1]
    %v62 = vld [vmem:[#allocation6] sm:$0xff]
    %v63 = vld [vmem:[#allocation6 + $0x8] sm:$0xff]
    %v64 = vld [vmem:[#allocation6 + $0x10] sm:$0xff]
    %v65 = vld [vmem:[#allocation6 + $0x18] sm:$0xff]
    %v66 = vld [vmem:[#allocation6 + $0x20] sm:$0xff]
    %v67 = vld [vmem:[#allocation6 + $0x28] sm:$0xff]
    %v68 = vld [vmem:[#allocation6 + $0x30] sm:$0xff]
    %v69 = vld [vmem:[#allocation6 + $0x38] sm:$0xff]
    %v70 = vld [vmem:[#allocation6 + $0x40] sm:$0xff]
    %v71 = vld [vmem:[#allocation6 + $0x48] sm:$0xff]
    %v72 = vld [vmem:[#allocation6 + $0x50] sm:$0xff]
    %v73 = vld [vmem:[#allocation6 + $0x58] sm:$0xff]
    %v74 = vld [vmem:[#allocation6 + $0x60] sm:$0xff]
    %v75 = vld [vmem:[#allocation6 + $0x68] sm:$0xff]
    %v76 = vld [vmem:[#allocation6 + $0x70] sm:$0xff]
    %v77 = vld [vmem:[#allocation6 + $0x78] sm:$0xff]
    %v78 = vld [vmem:[#allocation6 + $0x80] sm:$0xff]
    %v79 = vld [vmem:[#allocation6 + $0x88] sm:$0xff]
    %v80 = vld [vmem:[#allocation6 + $0x90] sm:$0xff]
    %v81 = vld [vmem:[#allocation6 + $0x98] sm:$0xff]
    %v82 = vld [vmem:[#allocation6 + $0xa0] sm:$0xff]
    %v83 = vld [vmem:[#allocation6 + $0xa8] sm:$0xff]
    %v84 = vld [vmem:[#allocation6 + $0xb0] sm:$0xff]
    %v85 = vld [vmem:[#allocation6 + $0xb8] sm:$0xff]
    %v86 = vld [vmem:[#allocation6 + $0xc0] sm:$0xff]
    %v87 = vld [vmem:[#allocation6 + $0xc8] sm:$0xff]
    %v88 = vld [vmem:[#allocation6 + $0xd0] sm:$0xff]
    %v89 = vld [vmem:[#allocation6 + $0xd8] sm:$0xff]
    %v90 = vld [vmem:[#allocation6 + $0xe0] sm:$0xff]
    %v91 = vld [vmem:[#allocation6 + $0xe8] sm:$0xff]
    %v92 = vld [vmem:[#allocation6 + $0xf0] sm:$0xff]
    %v93 = vld [vmem:[#allocation6 + $0xf8] sm:$0xff]
    %v94 = vld [vmem:[#allocation6 + $0x100] sm:$0xff]
    %v95 = vld [vmem:[#allocation6 + $0x108] sm:$0xff]
    %v96 = vld [vmem:[#allocation6 + $0x110] sm:$0xff]
    %v97 = vld [vmem:[#allocation6 + $0x118] sm:$0xff]
    %v98 = vld [vmem:[#allocation6 + $0x120] sm:$0xff]
    %v99 = vld [vmem:[#allocation6 + $0x128] sm:$0xff]
    %v100 = vld [vmem:[#allocation6 + $0x130] sm:$0xff]
    %v101 = vld [vmem:[#allocation6 + $0x138] sm:$0xff]
    %v102 = vld [vmem:[#allocation6 + $0x140] sm:$0xff]
    %v103 = vld [vmem:[#allocation6 + $0x148] sm:$0xff]
    %v104 = vld [vmem:[#allocation6 + $0x150] sm:$0xff]
    %v105 = vld [vmem:[#allocation6 + $0x158] sm:$0xff]
    %v106 = vld [vmem:[#allocation6 + $0x160] sm:$0xff]
    %v107 = vld [vmem:[#allocation6 + $0x168] sm:$0xff]
    %v108 = vld [vmem:[#allocation6 + $0x170] sm:$0xff]
    %v109 = vld [vmem:[#allocation6 + $0x178] sm:$0xff]
    %v110 = vld [vmem:[#allocation6 + $0x180] sm:$0xff]
    %v111 = vld [vmem:[#allocation6 + $0x188] sm:$0xff]
    %v112 = vld [vmem:[#allocation6 + $0x190] sm:$0xff]
    %v113 = vld [vmem:[#allocation6 + $0x198] sm:$0xff]
    %v114 = vld [vmem:[#allocation6 + $0x1a0] sm:$0xff]
    %v115 = vld [vmem:[#allocation6 + $0x1a8] sm:$0xff]
    %v116 = vld [vmem:[#allocation6 + $0x1b0] sm:$0xff]
    %v117 = vld [vmem:[#allocation6 + $0x1b8] sm:$0xff]
    %v118 = vld [vmem:[#allocation6 + $0x1c0] sm:$0xff]
    %v119 = vld [vmem:[#allocation6 + $0x1c8] sm:$0xff]
    %v120 = vld [vmem:[#allocation6 + $0x1d0] sm:$0xff]
    %v121 = vld [vmem:[#allocation6 + $0x1d8] sm:$0xff]
    %v122 = vld [vmem:[#allocation6 + $0x1e0] sm:$0xff]
    %v123 = vld [vmem:[#allocation6 + $0x1e8] sm:$0xff]
    %v124 = vld [vmem:[#allocation6 + $0x1f0] sm:$0xff]
    %v125 = vld [vmem:[#allocation6 + $0x1f8] sm:$0xff]
    %v126 = vld [vmem:[#allocation6 + $0x200] sm:$0xff]
    %v127 = vld [vmem:[#allocation6 + $0x208] sm:$0xff]
    %v128 = vld [vmem:[#allocation6 + $0x210] sm:$0xff]
    %v129 = vld [vmem:[#allocation6 + $0x218] sm:$0xff]
    %v130 = vld [vmem:[#allocation6 + $0x220] sm:$0xff]
    %v131 = vld [vmem:[#allocation6 + $0x228] sm:$0xff]
    %v132 = vld [vmem:[#allocation6 + $0x230] sm:$0xff]
    %v133 = vld [vmem:[#allocation6 + $0x238] sm:$0xff]
    %v134 = vld [vmem:[#allocation6 + $0x240] sm:$0xff]
    %v135 = vld [vmem:[#allocation6 + $0x248] sm:$0xff]
    %v136 = vld [vmem:[#allocation6 + $0x250] sm:$0xff]
    %v137 = vld [vmem:[#allocation6 + $0x258] sm:$0xff]
    %v138 = vld [vmem:[#allocation6 + $0x260] sm:$0xff]
    %v139 = vld [vmem:[#allocation6 + $0x268] sm:$0xff]
    %v140 = vld [vmem:[#allocation6 + $0x270] sm:$0xff]
    %v141 = vld [vmem:[#allocation6 + $0x278] sm:$0xff]
    %v142 = vld [vmem:[#allocation6 + $0x280] sm:$0xff]
    %v143 = vld [vmem:[#allocation6 + $0x288] sm:$0xff]
    %v144 = vld [vmem:[#allocation6 + $0x290] sm:$0xff]
    %v145 = vld [vmem:[#allocation6 + $0x298] sm:$0xff]
    %v146 = vld [vmem:[#allocation8] sm:$0xff]
    %v147 = vld [vmem:[#allocation8 + $0x8] sm:$0xff]
    %v148 = vld [vmem:[#allocation8 + $0x10] sm:$0xff]
    %v149 = vld [vmem:[#allocation8 + $0x18] sm:$0xff]
    %v150 = vld [vmem:[#allocation8 + $0x20] sm:$0xff]
    %v151 = vld [vmem:[#allocation8 + $0x28] sm:$0xff]
    %v152 = vld [vmem:[#allocation8 + $0x30] sm:$0xff]
    %v153 = vld [vmem:[#allocation8 + $0x38] sm:$0xff]
    %v154 = vld [vmem:[#allocation8 + $0x40] sm:$0xff]
    %v155 = vld [vmem:[#allocation8 + $0x48] sm:$0xff]
    %v156 = vld [vmem:[#allocation8 + $0x50] sm:$0xff]
    %v157 = vld [vmem:[#allocation8 + $0x58] sm:$0xff]
    %v158 = vld [vmem:[#allocation8 + $0x60] sm:$0xff]
    %v159 = vld [vmem:[#allocation8 + $0x68] sm:$0xff]
    %v160 = vld [vmem:[#allocation8 + $0x70] sm:$0xff]
    %v161 = vld [vmem:[#allocation8 + $0x78] sm:$0xff]
    %v162 = vld [vmem:[#allocation8 + $0x80] sm:$0xff]
    %v163 = vld [vmem:[#allocation8 + $0x88] sm:$0xff]
    %v164 = vld [vmem:[#allocation8 + $0x90] sm:$0xff]
    %v165 = vld [vmem:[#allocation8 + $0x98] sm:$0xff]
    %v166 = vld [vmem:[#allocation8 + $0xa0] sm:$0xff]
    %v167 = vld [vmem:[#allocation8 + $0xa8] sm:$0xff]
    %v168 = vld [vmem:[#allocation8 + $0xb0] sm:$0xff]
    %v169 = vld [vmem:[#allocation8 + $0xb8] sm:$0xff]
    %v170 = vld [vmem:[#allocation8 + $0xc0] sm:$0xff]
    %v171 = vld [vmem:[#allocation8 + $0xc8] sm:$0xff]
    %v172 = vld [vmem:[#allocation8 + $0xd0] sm:$0xff]
    %v173 = vld [vmem:[#allocation8 + $0xd8] sm:$0xff]
    %v174 = vld [vmem:[#allocation8 + $0xe0] sm:$0xff]
    %v175 = vld [vmem:[#allocation8 + $0xe8] sm:$0xff]
    %v176 = vld [vmem:[#allocation8 + $0xf0] sm:$0xff]
    %v177 = vld [vmem:[#allocation8 + $0xf8] sm:$0xff]
    %v178 = vld [vmem:[#allocation8 + $0x100] sm:$0xff]
    %v179 = vld [vmem:[#allocation8 + $0x108] sm:$0xff]
    %v180 = vld [vmem:[#allocation8 + $0x110] sm:$0xff]
    %v181 = vld [vmem:[#allocation8 + $0x118] sm:$0xff]
    %v182 = vld [vmem:[#allocation8 + $0x120] sm:$0xff]
    %v183 = vld [vmem:[#allocation8 + $0x128] sm:$0xff]
    %v184 = vld [vmem:[#allocation8 + $0x130] sm:$0xff]
    %v185 = vld [vmem:[#allocation8 + $0x138] sm:$0xff]
    %v186 = vld [vmem:[#allocation8 + $0x140] sm:$0xff]
    %v187 = vld [vmem:[#allocation8 + $0x148] sm:$0xff]
    %v188 = vld [vmem:[#allocation8 + $0x150] sm:$0xff]
    %v189 = vld [vmem:[#allocation8 + $0x158] sm:$0xff]
    %v190 = vld [vmem:[#allocation8 + $0x160] sm:$0xff]
    %v191 = vld [vmem:[#allocation8 + $0x168] sm:$0xff]
    %v192 = vld [vmem:[#allocation8 + $0x170] sm:$0xff]
    %v193 = vld [vmem:[#allocation8 + $0x178] sm:$0xff]
    %v194 = vld [vmem:[#allocation8 + $0x180] sm:$0xff]
    %v195 = vld [vmem:[#allocation8 + $0x188] sm:$0xff]
    %v196 = vld [vmem:[#allocation8 + $0x190] sm:$0xff]
    %v197 = vld [vmem:[#allocation8 + $0x198] sm:$0xff]
    %v198 = vld [vmem:[#allocation8 + $0x1a0] sm:$0xff]
    %v199 = vld [vmem:[#allocation8 + $0x1a8] sm:$0xff]
    %v200 = vld [vmem:[#allocation8 + $0x1b0] sm:$0xff]
    %v201 = vld [vmem:[#allocation8 + $0x1b8] sm:$0xff]
    %v202 = vld [vmem:[#allocation8 + $0x1c0] sm:$0xff]
    %v203 = vld [vmem:[#allocation8 + $0x1c8] sm:$0xff]
    %v204 = vld [vmem:[#allocation8 + $0x1d0] sm:$0xff]
    %v205 = vld [vmem:[#allocation8 + $0x1d8] sm:$0xff]
    %v206 = vld [vmem:[#allocation8 + $0x1e0] sm:$0xff]
    %v207 = vld [vmem:[#allocation8 + $0x1e8] sm:$0xff]
    %v208 = vld [vmem:[#allocation8 + $0x1f0] sm:$0xff]
    %v209 = vld [vmem:[#allocation8 + $0x1f8] sm:$0xff]
    %v210 = vld [vmem:[#allocation8 + $0x200] sm:$0xff]
    %v211 = vld [vmem:[#allocation8 + $0x208] sm:$0xff]
    %v212 = vld [vmem:[#allocation8 + $0x210] sm:$0xff]
    %v213 = vld [vmem:[#allocation8 + $0x218] sm:$0xff]
    %v214 = vld [vmem:[#allocation8 + $0x220] sm:$0xff]
    %v215 = vld [vmem:[#allocation8 + $0x228] sm:$0xff]
    %v216 = vld [vmem:[#allocation8 + $0x230] sm:$0xff]
    %v217 = vld [vmem:[#allocation8 + $0x238] sm:$0xff]
    %v218 = vld [vmem:[#allocation8 + $0x240] sm:$0xff]
    %v219 = vld [vmem:[#allocation8 + $0x248] sm:$0xff]
    %v220 = vld [vmem:[#allocation8 + $0x250] sm:$0xff]
    %v221 = vld [vmem:[#allocation8 + $0x258] sm:$0xff]
    %v222 = vld [vmem:[#allocation8 + $0x260] sm:$0xff]
    %v223 = vld [vmem:[#allocation8 + $0x268] sm:$0xff]
    %v224 = vld [vmem:[#allocation8 + $0x270] sm:$0xff]
    %v225 = vld [vmem:[#allocation8 + $0x278] sm:$0xff]
    %v226 = vld [vmem:[#allocation8 + $0x280] sm:$0xff]
    %v227 = vld [vmem:[#allocation8 + $0x288] sm:$0xff]
    %v228 = vld [vmem:[#allocation8 + $0x290] sm:$0xff]
    %v229 = vld [vmem:[#allocation8 + $0x298] sm:$0xff]
    %v230 = vld [vmem:[#allocation8 + $0x2a0] sm:$0xff]
    %v231 = vld [vmem:[#allocation8 + $0x2a8] sm:$0xff]
    %v232 = vld [vmem:[#allocation8 + $0x2b0] sm:$0xff]
    %v233 = vld [vmem:[#allocation8 + $0x2b8] sm:$0xff]
    %v234 = vld [vmem:[#allocation8 + $0x2c0] sm:$0xff]
    %v235 = vld [vmem:[#allocation8 + $0x2c8] sm:$0xff]
    %v236 = vld [vmem:[#allocation8 + $0x2d0] sm:$0xff]
    %v237 = vld [vmem:[#allocation8 + $0x2d8] sm:$0xff]
    %v238 = vld [vmem:[#allocation8 + $0x2e0] sm:$0xff]
    %v239 = vld [vmem:[#allocation8 + $0x2e8] sm:$0xff]
    %v240 = vld [vmem:[#allocation8 + $0x2f0] sm:$0xff]
    %v241 = vld [vmem:[#allocation8 + $0x2f8] sm:$0xff]
    %v242 = vld [vmem:[#allocation8 + $0x300] sm:$0xff]
    %v243 = vld [vmem:[#allocation8 + $0x308] sm:$0xff]
    %v244 = vld [vmem:[#allocation8 + $0x310] sm:$0xff]
    %v245 = vld [vmem:[#allocation8 + $0x318] sm:$0xff]
    %v246 = vld [vmem:[#allocation8 + $0x320] sm:$0xff]
    %v247 = vld [vmem:[#allocation8 + $0x328] sm:$0xff]
    %v248 = vld [vmem:[#allocation8 + $0x330] sm:$0xff]
    %v249 = vld [vmem:[#allocation8 + $0x338] sm:$0xff]
    %v250 = vld [vmem:[#allocation8 + $0x340] sm:$0xff]
    %v251 = vld [vmem:[#allocation8 + $0x348] sm:$0xff]
    %v252 = vld [vmem:[#allocation8 + $0x350] sm:$0xff]
    %v253 = vld [vmem:[#allocation8 + $0x358] sm:$0xff]
    %v254 = vld [vmem:[#allocation8 + $0x360] sm:$0xff]
    %v255 = vld [vmem:[#allocation8 + $0x368] sm:$0xff]
    %v256 = vld [vmem:[#allocation8 + $0x370] sm:$0xff]
    %v257 = vld [vmem:[#allocation8 + $0x378] sm:$0xff]
    %v258 = vld [vmem:[#allocation8 + $0x380] sm:$0xff]
    %v259 = vld [vmem:[#allocation8 + $0x388] sm:$0xff]
    %v260 = vld [vmem:[#allocation8 + $0x390] sm:$0xff]
    %v261 = vld [vmem:[#allocation8 + $0x398] sm:$0xff]
    %v262 = vld [vmem:[#allocation8 + $0x3a0] sm:$0xff]
    %v263 = vld [vmem:[#allocation8 + $0x3a8] sm:$0xff]
    %v264 = vld [vmem:[#allocation8 + $0x3b0] sm:$0xff]
    %v265 = vld [vmem:[#allocation8 + $0x3b8] sm:$0xff]
    %v266 = vld [vmem:[#allocation8 + $0x3c0] sm:$0xff]
    %v267 = vld [vmem:[#allocation8 + $0x3c8] sm:$0xff]
    %v268 = vld [vmem:[#allocation8 + $0x3d0] sm:$0xff]
    %v269 = vld [vmem:[#allocation8 + $0x3d8] sm:$0xff]
    %v270 = vld [vmem:[#allocation8 + $0x3e0] sm:$0xff]
    %v271 = vld [vmem:[#allocation8 + $0x3e8] sm:$0xff]
    %v272 = vld [vmem:[#allocation8 + $0x3f0] sm:$0xff]
    %v273 = vld [vmem:[#allocation8 + $0x3f8] sm:$0xff]
    %v274 = vld [vmem:[#allocation8 + $0x400] sm:$0xff]
    %v275 = vld [vmem:[#allocation8 + $0x408] sm:$0xff]
    %v276 = vld [vmem:[#allocation8 + $0x410] sm:$0xff]
    %v277 = vld [vmem:[#allocation8 + $0x418] sm:$0xff]
    %v278 = vld [vmem:[#allocation8 + $0x420] sm:$0xff]
    %v279 = vld [vmem:[#allocation8 + $0x428] sm:$0xff]
    %v280 = vld [vmem:[#allocation8 + $0x430] sm:$0xff]
    %v281 = vld [vmem:[#allocation8 + $0x438] sm:$0xff]
    %v282 = vld [vmem:[#allocation8 + $0x440] sm:$0xff]
    %v283 = vld [vmem:[#allocation8 + $0x448] sm:$0xff]
    %v284 = vld [vmem:[#allocation8 + $0x450] sm:$0xff]
    %v285 = vld [vmem:[#allocation8 + $0x458] sm:$0xff]
    %v286 = vld [vmem:[#allocation8 + $0x460] sm:$0xff]
    %v287 = vld [vmem:[#allocation8 + $0x468] sm:$0xff]
    %v288 = vld [vmem:[#allocation8 + $0x470] sm:$0xff]
    %v289 = vld [vmem:[#allocation8 + $0x478] sm:$0xff]
    %v290 = vld [vmem:[#allocation8 + $0x480] sm:$0xff]
    %v291 = vld [vmem:[#allocation8 + $0x488] sm:$0xff]
    %v292 = vld [vmem:[#allocation8 + $0x490] sm:$0xff]
    %v293 = vld [vmem:[#allocation8 + $0x498] sm:$0xff]
    %v294 = vld [vmem:[#allocation8 + $0x4a0] sm:$0xff]
    %v295 = vld [vmem:[#allocation8 + $0x4a8] sm:$0xff]
    %v296 = vld [vmem:[#allocation8 + $0x4b0] sm:$0xff]
    %v297 = vld [vmem:[#allocation8 + $0x4b8] sm:$0xff]
    %v298 = vld [vmem:[#allocation8 + $0x4c0] sm:$0xff]
    %v299 = vld [vmem:[#allocation8 + $0x4c8] sm:$0xff]
    %v300 = vld [vmem:[#allocation8 + $0x4d0] sm:$0xff]
    %v301 = vld [vmem:[#allocation8 + $0x4d8] sm:$0xff]
    %v302 = vld [vmem:[#allocation8 + $0x4e0] sm:$0xff]
    %v303 = vld [vmem:[#allocation8 + $0x4e8] sm:$0xff]
    %v304 = vld [vmem:[#allocation8 + $0x4f0] sm:$0xff]
    %v305 = vld [vmem:[#allocation8 + $0x4f8] sm:$0xff]
    %v306 = vld [vmem:[#allocation8 + $0x500] sm:$0xff]
    %v307 = vld [vmem:[#allocation8 + $0x508] sm:$0xff]
    %v308 = vld [vmem:[#allocation8 + $0x510] sm:$0xff]
    %v309 = vld [vmem:[#allocation8 + $0x518] sm:$0xff]
    %v310 = vld [vmem:[#allocation8 + $0x520] sm:$0xff]
    %v311 = vld [vmem:[#allocation8 + $0x528] sm:$0xff]
    %v312 = vld [vmem:[#allocation8 + $0x530] sm:$0xff]
    %v313 = vld [vmem:[#allocation8 + $0x538] sm:$0xff]
    %v314 = vld [vmem:[#allocation8 + $0x540] sm:$0xff]
    %v315 = vld [vmem:[#allocation8 + $0x548] sm:$0xff]
    %v316 = vld [vmem:[#allocation8 + $0x550] sm:$0xff]
    %v317 = vld [vmem:[#allocation8 + $0x558] sm:$0xff]
    %v318 = vld [vmem:[#allocation8 + $0x560] sm:$0xff]
    %v319 = vld [vmem:[#allocation8 + $0x568] sm:$0xff]
    %v320 = vld [vmem:[#allocation8 + $0x570] sm:$0xff]
    %v321 = vld [vmem:[#allocation8 + $0x578] sm:$0xff]
    %v322 = vld [vmem:[#allocation8 + $0x580] sm:$0xff]
    %v323 = vld [vmem:[#allocation8 + $0x588] sm:$0xff]
    %v324 = vld [vmem:[#allocation8 + $0x590] sm:$0xff]
    %v325 = vld [vmem:[#allocation8 + $0x598] sm:$0xff]
    %v326 = vld [vmem:[#allocation8 + $0x5a0] sm:$0xff]
    %v327 = vld [vmem:[#allocation8 + $0x5a8] sm:$0xff]
    %vm328 = vcmask 850944
    %v330 = vsel %vm328, %v61, 0
    %332 = vmatprep.subr.mxu0 0.0
    %333 = vmatpush1.msra.mxu0 0.0
    %334 = vmatprep.subr.mxu0 0.0
    %335 = vmatpush1.msra.mxu0 0.0
    %336 = vmatprep.subr.mxu0 0.0
    %337 = vmatpush1.msra.mxu0 0.0
    %338 = vmatprep.subr.mxu0 %v315
    %339 = vmatpush1.msra.mxu0 %v314
    %340 = vmatprep.subr.mxu0 %v301
    %341 = vmatpush1.msra.mxu0 %v300
    %342 = vmatprep.subr.mxu0 %v287
    %343 = vmatpush1.msra.mxu0 %v286
    %344 = vmatprep.subr.mxu0 %v273
    %345 = vmatpush1.msra.mxu0 %v272
    %346 = vmatprep.subr.mxu0 %v259
    %347 = vmatpush1.msra.mxu0 %v258
    %348 = vmatprep.subr.mxu0 %v245
    %349 = vmatpush1.msra.mxu0 %v244
    %350 = vmatprep.subr.mxu0 %v231
    %351 = vmatpush1.msra.mxu0 %v230
    %352 = vmatprep.subr.mxu0 %v217
    %353 = vmatpush1.msra.mxu0 %v216
    %354 = vmatprep.subr.mxu0 %v203
    %355 = vmatpush1.msra.mxu0 %v202
    %356 = vmatprep.subr.mxu0 %v189
    %357 = vmatpush1.msra.mxu0 %v188
    %358 = vmatprep.subr.mxu0 %v175
    %359 = vmatpush1.msra.mxu0 %v174
    %360 = vmatprep.subr.mxu0 %v161
    %361 = vmatpush1.msra.mxu0 %v160
    %362 = vmatprep.subr.mxu0 %v147
    %363 = vmatpush1.msra.mxu0 %v146
    %364 = vmatprep.subr.mxu0 0.0
    %365 = vmatpush2.msra.mxu0 0.0
    %366 = vmatprep.subr.mxu0 0.0
    %367 = vmatpush2.msra.mxu0 0.0
    %368 = vmatprep.subr.mxu0 0.0
    %369 = vmatpush2.msra.mxu0 0.0
    %370 = vmatprep.subr.mxu0 0.0
    %371 = vmatpush2.msra.mxu0 0.0
    %372 = vmatprep.subr.mxu0 0.0
    %373 = vmatpush2.msra.mxu0 0.0
    %374 = vmatprep.subr.mxu0 0.0
    %375 = vmatpush2.msra.mxu0 0.0
    %376 = vmatprep.subr.mxu0 0.0
    %377 = vmatpush2.msra.mxu0 0.0
    %378 = vmatprep.subr.mxu0 0.0
    %379 = vmatpush2.msra.mxu0 0.0
    %380 = vmatprep.subr.mxu0 0.0
    %381 = vmatpush2.msra.mxu0 0.0
    %382 = vmatprep.subr.mxu0 0.0
    %383 = vmatpush2.msra.mxu0 0.0
    %384 = vmatprep.subr.mxu0 0.0
    %385 = vmatpush2.msra.mxu0 0.0
    %386 = vmatprep.subr.mxu0 0.0
    %387 = vmatpush2.msra.mxu0 0.0
    %388 = vmatprep.subr.mxu0 0.0
    %389 = vmatpush2.msra.mxu0 0.0
    %390 = vmatprep.subr.mxu0 0.0
    %391 = vmatpush2.msra.mxu0 0.0
    %392 = vmatprep.subr.mxu0 0.0
    %393 = vmatpush2.msra.mxu0 0.0
    %394 = vmatprep.subr.mxu0 0.0
    %395 = vmatpush2.msra.mxu0 0.0
    %396 = vmatprep.mubr.f32.mxu0 0.0
    %397 = vmatmul.mubr.f32.gmra.mxu0 %v330
    %v398 = vpop.f32.mrf.mxu0
    %v399 = vadd.f32 0.0, %v398
    %v400 = vpop.f32.mrf.mxu0
    %v401 = vadd.f32 0.0, %v400
    %402 = vdwg.mxu0
    %403 = vmatprep.subr.mxu0 0.0
    %404 = vmatpush1.msra.mxu0 0.0
    %405 = vmatprep.subr.mxu0 0.0
    %406 = vmatpush1.msra.mxu0 0.0
    %407 = vmatprep.subr.mxu0 0.0
    %408 = vmatpush1.msra.mxu0 0.0
    %409 = vmatprep.subr.mxu0 %v317
    %410 = vmatpush1.msra.mxu0 %v316
    %411 = vmatprep.subr.mxu0 %v303
    %412 = vmatpush1.msra.mxu0 %v302
    %413 = vmatprep.subr.mxu0 %v289
    %414 = vmatpush1.msra.mxu0 %v288
    %415 = vmatprep.subr.mxu0 %v275
    %416 = vmatpush1.msra.mxu0 %v274
    %417 = vmatprep.subr.mxu0 %v261
    %418 = vmatpush1.msra.mxu0 %v260
    %419 = vmatprep.subr.mxu0 %v247
    %420 = vmatpush1.msra.mxu0 %v246
    %421 = vmatprep.subr.mxu0 %v233
    %422 = vmatpush1.msra.mxu0 %v232
    %423 = vmatprep.subr.mxu0 %v219
    %424 = vmatpush1.msra.mxu0 %v218
    %425 = vmatprep.subr.mxu0 %v205
    %426 = vmatpush1.msra.mxu0 %v204
    %427 = vmatprep.subr.mxu0 %v191
    %428 = vmatpush1.msra.mxu0 %v190
    %429 = vmatprep.subr.mxu0 %v177
    %430 = vmatpush1.msra.mxu0 %v176
    %431 = vmatprep.subr.mxu0 %v163
    %432 = vmatpush1.msra.mxu0 %v162
    %433 = vmatprep.subr.mxu0 %v149
    %434 = vmatpush1.msra.mxu0 %v148
    %435 = vmatprep.subr.mxu0 0.0
    %436 = vmatpush2.msra.mxu0 0.0
    %437 = vmatprep.subr.mxu0 0.0
    %438 = vmatpush2.msra.mxu0 0.0
    %439 = vmatprep.subr.mxu0 0.0
    %440 = vmatpush2.msra.mxu0 0.0
    %441 = vmatprep.subr.mxu0 0.0
    %442 = vmatpush2.msra.mxu0 0.0
    %443 = vmatprep.subr.mxu0 0.0
    %444 = vmatpush2.msra.mxu0 0.0
    %445 = vmatprep.subr.mxu0 0.0
    %446 = vmatpush2.msra.mxu0 0.0
    %447 = vmatprep.subr.mxu0 0.0
    %448 = vmatpush2.msra.mxu0 0.0
    %449 = vmatprep.subr.mxu0 0.0
    %450 = vmatpush2.msra.mxu0 0.0
    %451 = vmatprep.subr.mxu0 0.0
    %452 = vmatpush2.msra.mxu0 0.0
    %453 = vmatprep.subr.mxu0 0.0
    %454 = vmatpush2.msra.mxu0 0.0
    %455 = vmatprep.subr.mxu0 0.0
    %456 = vmatpush2.msra.mxu0 0.0
    %457 = vmatprep.subr.mxu0 0.0
    %458 = vmatpush2.msra.mxu0 0.0
    %459 = vmatprep.subr.mxu0 0.0
    %460 = vmatpush2.msra.mxu0 0.0
    %461 = vmatprep.subr.mxu0 0.0
    %462 = vmatpush2.msra.mxu0 0.0
    %463 = vmatprep.subr.mxu0 0.0
    %464 = vmatpush2.msra.mxu0 0.0
    %465 = vmatprep.subr.mxu0 0.0
    %466 = vmatpush2.msra.mxu0 0.0
    %467 = vmatprep.mubr.f32.mxu0 0.0
    %468 = vmatmul.mubr.f32.gmra.mxu0 %v330
    %v469 = vpop.f32.mrf.mxu0
    %v470 = vadd.f32 0.0, %v469
    %v471 = vpop.f32.mrf.mxu0
    %v472 = vadd.f32 0.0, %v471
    %473 = vdwg.mxu0
    %474 = vmatprep.subr.mxu0 0.0
    %475 = vmatpush1.msra.mxu0 0.0
    %476 = vmatprep.subr.mxu0 0.0
    %477 = vmatpush1.msra.mxu0 0.0
    %478 = vmatprep.subr.mxu0 0.0
    %479 = vmatpush1.msra.mxu0 0.0
    %480 = vmatprep.subr.mxu0 %v319
    %481 = vmatpush1.msra.mxu0 %v318
    %482 = vmatprep.subr.mxu0 %v305
    %483 = vmatpush1.msra.mxu0 %v304
    %484 = vmatprep.subr.mxu0 %v291
    %485 = vmatpush1.msra.mxu0 %v290
    %486 = vmatprep.subr.mxu0 %v277
    %487 = vmatpush1.msra.mxu0 %v276
    %488 = vmatprep.subr.mxu0 %v263
    %489 = vmatpush1.msra.mxu0 %v262
    %490 = vmatprep.subr.mxu0 %v249
    %491 = vmatpush1.msra.mxu0 %v248
    %492 = vmatprep.subr.mxu0 %v235
    %493 = vmatpush1.msra.mxu0 %v234
    %494 = vmatprep.subr.mxu0 %v221
    %495 = vmatpush1.msra.mxu0 %v220
    %496 = vmatprep.subr.mxu0 %v207
    %497 = vmatpush1.msra.mxu0 %v206
    %498 = vmatprep.subr.mxu0 %v193
    %499 = vmatpush1.msra.mxu0 %v192
    %500 = vmatprep.subr.mxu0 %v179
    %501 = vmatpush1.msra.mxu0 %v178
    %502 = vmatprep.subr.mxu0 %v165
    %503 = vmatpush1.msra.mxu0 %v164
    %504 = vmatprep.subr.mxu0 %v151
    %505 = vmatpush1.msra.mxu0 %v150
    %506 = vmatprep.subr.mxu0 0.0
    %507 = vmatpush2.msra.mxu0 0.0
    %508 = vmatprep.subr.mxu0 0.0
    %509 = vmatpush2.msra.mxu0 0.0
    %510 = vmatprep.subr.mxu0 0.0
    %511 = vmatpush2.msra.mxu0 0.0
    %512 = vmatprep.subr.mxu0 0.0
    %513 = vmatpush2.msra.mxu0 0.0
    %514 = vmatprep.subr.mxu0 0.0
    %515 = vmatpush2.msra.mxu0 0.0
    %516 = vmatprep.subr.mxu0 0.0
    %517 = vmatpush2.msra.mxu0 0.0
    %518 = vmatprep.subr.mxu0 0.0
    %519 = vmatpush2.msra.mxu0 0.0
    %520 = vmatprep.subr.mxu0 0.0
    %521 = vmatpush2.msra.mxu0 0.0
    %522 = vmatprep.subr.mxu0 0.0
    %523 = vmatpush2.msra.mxu0 0.0
    %524 = vmatprep.subr.mxu0 0.0
    %525 = vmatpush2.msra.mxu0 0.0
    %526 = vmatprep.subr.mxu0 0.0
    %527 = vmatpush2.msra.mxu0 0.0
    %528 = vmatprep.subr.mxu0 0.0
    %529 = vmatpush2.msra.mxu0 0.0
    %530 = vmatprep.subr.mxu0 0.0
    %531 = vmatpush2.msra.mxu0 0.0
    %532 = vmatprep.subr.mxu0 0.0
    %533 = vmatpush2.msra.mxu0 0.0
    %534 = vmatprep.subr.mxu0 0.0
    %535 = vmatpush2.msra.mxu0 0.0
    %536 = vmatprep.subr.mxu0 0.0
    %537 = vmatpush2.msra.mxu0 0.0
    %538 = vmatprep.mubr.f32.mxu0 0.0
    %539 = vmatmul.mubr.f32.gmra.mxu0 %v330
    %v540 = vpop.f32.mrf.mxu0
    %v541 = vadd.f32 0.0, %v540
    %v542 = vpop.f32.mrf.mxu0
    %v543 = vadd.f32 0.0, %v542
    %544 = vdwg.mxu0
    %545 = vmatprep.subr.mxu0 0.0
    %546 = vmatpush1.msra.mxu0 0.0
    %547 = vmatprep.subr.mxu0 0.0
    %548 = vmatpush1.msra.mxu0 0.0
    %549 = vmatprep.subr.mxu0 0.0
    %550 = vmatpush1.msra.mxu0 0.0
    %551 = vmatprep.subr.mxu0 %v321
    %552 = vmatpush1.msra.mxu0 %v320
    %553 = vmatprep.subr.mxu0 %v307
    %554 = vmatpush1.msra.mxu0 %v306
    %555 = vmatprep.subr.mxu0 %v293
    %556 = vmatpush1.msra.mxu0 %v292
    %557 = vmatprep.subr.mxu0 %v279
    %558 = vmatpush1.msra.mxu0 %v278
    %559 = vmatprep.subr.mxu0 %v265
    %560 = vmatpush1.msra.mxu0 %v264
    %561 = vmatprep.subr.mxu0 %v251
    %562 = vmatpush1.msra.mxu0 %v250
    %563 = vmatprep.subr.mxu0 %v237
    %564 = vmatpush1.msra.mxu0 %v236
    %565 = vmatprep.subr.mxu0 %v223
    %566 = vmatpush1.msra.mxu0 %v222
    %567 = vmatprep.subr.mxu0 %v209
    %568 = vmatpush1.msra.mxu0 %v208
    %569 = vmatprep.subr.mxu0 %v195
    %570 = vmatpush1.msra.mxu0 %v194
    %571 = vmatprep.subr.mxu0 %v181
    %572 = vmatpush1.msra.mxu0 %v180
    %573 = vmatprep.subr.mxu0 %v167
    %574 = vmatpush1.msra.mxu0 %v166
    %575 = vmatprep.subr.mxu0 %v153
    %576 = vmatpush1.msra.mxu0 %v152
    %577 = vmatprep.subr.mxu0 0.0
    %578 = vmatpush2.msra.mxu0 0.0
    %579 = vmatprep.subr.mxu0 0.0
    %580 = vmatpush2.msra.mxu0 0.0
    %581 = vmatprep.subr.mxu0 0.0
    %582 = vmatpush2.msra.mxu0 0.0
    %583 = vmatprep.subr.mxu0 0.0
    %584 = vmatpush2.msra.mxu0 0.0
    %585 = vmatprep.subr.mxu0 0.0
    %586 = vmatpush2.msra.mxu0 0.0
    %587 = vmatprep.subr.mxu0 0.0
    %588 = vmatpush2.msra.mxu0 0.0
    %589 = vmatprep.subr.mxu0 0.0
    %590 = vmatpush2.msra.mxu0 0.0
    %591 = vmatprep.subr.mxu0 0.0
    %592 = vmatpush2.msra.mxu0 0.0
    %593 = vmatprep.subr.mxu0 0.0
    %594 = vmatpush2.msra.mxu0 0.0
    %595 = vmatprep.subr.mxu0 0.0
    %596 = vmatpush2.msra.mxu0 0.0
    %597 = vmatprep.subr.mxu0 0.0
    %598 = vmatpush2.msra.mxu0 0.0
    %599 = vmatprep.subr.mxu0 0.0
    %600 = vmatpush2.msra.mxu0 0.0
    %601 = vmatprep.subr.mxu0 0.0
    %602 = vmatpush2.msra.mxu0 0.0
    %603 = vmatprep.subr.mxu0 0.0
    %604 = vmatpush2.msra.mxu0 0.0
    %605 = vmatprep.subr.mxu0 0.0
    %606 = vmatpush2.msra.mxu0 0.0
    %607 = vmatprep.subr.mxu0 0.0
    %608 = vmatpush2.msra.mxu0 0.0
    %609 = vmatprep.mubr.f32.mxu0 0.0
    %610 = vmatmul.mubr.f32.gmra.mxu0 %v330
    %v611 = vpop.f32.mrf.mxu0
    %v612 = vadd.f32 0.0, %v611
    %v613 = vpop.f32.mrf.mxu0
    %v614 = vadd.f32 0.0, %v613
    %615 = vdwg.mxu0
    %616 = vmatprep.subr.mxu0 0.0
    %617 = vmatpush1.msra.mxu0 0.0
    %618 = vmatprep.subr.mxu0 0.0
    %619 = vmatpush1.msra.mxu0 0.0
    %620 = vmatprep.subr.mxu0 0.0
    %621 = vmatpush1.msra.mxu0 0.0
    %622 = vmatprep.subr.mxu0 %v323
    %623 = vmatpush1.msra.mxu0 %v322
    %624 = vmatprep.subr.mxu0 %v309
    %625 = vmatpush1.msra.mxu0 %v308
    %626 = vmatprep.subr.mxu0 %v295
    %627 = vmatpush1.msra.mxu0 %v294
    %628 = vmatprep.subr.mxu0 %v281
    %629 = vmatpush1.msra.mxu0 %v280
    %630 = vmatprep.subr.mxu0 %v267
    %631 = vmatpush1.msra.mxu0 %v266
    %632 = vmatprep.subr.mxu0 %v253
    %633 = vmatpush1.msra.mxu0 %v252
    %634 = vmatprep.subr.mxu0 %v239
    %635 = vmatpush1.msra.mxu0 %v238
    %636 = vmatprep.subr.mxu0 %v225
    %637 = vmatpush1.msra.mxu0 %v224
    %638 = vmatprep.subr.mxu0 %v211
    %639 = vmatpush1.msra.mxu0 %v210
    %640 = vmatprep.subr.mxu0 %v197
    %641 = vmatpush1.msra.mxu0 %v196
    %642 = vmatprep.subr.mxu0 %v183
    %643 = vmatpush1.msra.mxu0 %v182
    %644 = vmatprep.subr.mxu0 %v169
    %645 = vmatpush1.msra.mxu0 %v168
    %646 = vmatprep.subr.mxu0 %v155
    %647 = vmatpush1.msra.mxu0 %v154
    %648 = vmatprep.subr.mxu0 0.0
    %649 = vmatpush2.msra.mxu0 0.0
    %650 = vmatprep.subr.mxu0 0.0
    %651 = vmatpush2.msra.mxu0 0.0
    %652 = vmatprep.subr.mxu0 0.0
    %653 = vmatpush2.msra.mxu0 0.0
    %654 = vmatprep.subr.mxu0 0.0
    %655 = vmatpush2.msra.mxu0 0.0
    %656 = vmatprep.subr.mxu0 0.0
    %657 = vmatpush2.msra.mxu0 0.0
    %658 = vmatprep.subr.mxu0 0.0
    %659 = vmatpush2.msra.mxu0 0.0
    %660 = vmatprep.subr.mxu0 0.0
    %661 = vmatpush2.msra.mxu0 0.0
    %662 = vmatprep.subr.mxu0 0.0
    %663 = vmatpush2.msra.mxu0 0.0
    %664 = vmatprep.subr.mxu0 0.0
    %665 = vmatpush2.msra.mxu0 0.0
    %666 = vmatprep.subr.mxu0 0.0
    %667 = vmatpush2.msra.mxu0 0.0
    %668 = vmatprep.subr.mxu0 0.0
    %669 = vmatpush2.msra.mxu0 0.0
    %670 = vmatprep.subr.mxu0 0.0
    %671 = vmatpush2.msra.mxu0 0.0
    %672 = vmatprep.subr.mxu0 0.0
    %673 = vmatpush2.msra.mxu0 0.0
    %674 = vmatprep.subr.mxu0 0.0
    %675 = vmatpush2.msra.mxu0 0.0
    %676 = vmatprep.subr.mxu0 0.0
    %677 = vmatpush2.msra.mxu0 0.0
    %678 = vmatprep.subr.mxu0 0.0
    %679 = vmatpush2.msra.mxu0 0.0
    %680 = vmatprep.mubr.f32.mxu0 0.0
    %681 = vmatmul.mubr.f32.gmra.mxu0 %v330
    %v682 = vpop.f32.mrf.mxu0
    %v683 = vadd.f32 0.0, %v682
    %v684 = vpop.f32.mrf.mxu0
    %v685 = vadd.f32 0.0, %v684
    %686 = vdwg.mxu0
    %687 = vmatprep.subr.mxu0 0.0
    %688 = vmatpush1.msra.mxu0 0.0
    %689 = vmatprep.subr.mxu0 0.0
    %690 = vmatpush1.msra.mxu0 0.0
    %691 = vmatprep.subr.mxu0 0.0
    %692 = vmatpush1.msra.mxu0 0.0
    %693 = vmatprep.subr.mxu0 %v325
    %694 = vmatpush1.msra.mxu0 %v324
    %695 = vmatprep.subr.mxu0 %v311
    %696 = vmatpush1.msra.mxu0 %v310
    %697 = vmatprep.subr.mxu0 %v297
    %698 = vmatpush1.msra.mxu0 %v296
    %699 = vmatprep.subr.mxu0 %v283
    %700 = vmatpush1.msra.mxu0 %v282
    %701 = vmatprep.subr.mxu0 %v269
    %702 = vmatpush1.msra.mxu0 %v268
    %703 = vmatprep.subr.mxu0 %v255
    %704 = vmatpush1.msra.mxu0 %v254
    %705 = vmatprep.subr.mxu0 %v241
    %706 = vmatpush1.msra.mxu0 %v240
    %707 = vmatprep.subr.mxu0 %v227
    %708 = vmatpush1.msra.mxu0 %v226
    %709 = vmatprep.subr.mxu0 %v213
    %710 = vmatpush1.msra.mxu0 %v212
    %711 = vmatprep.subr.mxu0 %v199
    %712 = vmatpush1.msra.mxu0 %v198
    %713 = vmatprep.subr.mxu0 %v185
    %714 = vmatpush1.msra.mxu0 %v184
    %715 = vmatprep.subr.mxu0 %v171
    %716 = vmatpush1.msra.mxu0 %v170
    %717 = vmatprep.subr.mxu0 %v157
    %718 = vmatpush1.msra.mxu0 %v156
    %719 = vmatprep.subr.mxu0 0.0
    %720 = vmatpush2.msra.mxu0 0.0
    %721 = vmatprep.subr.mxu0 0.0
    %722 = vmatpush2.msra.mxu0 0.0
    %723 = vmatprep.subr.mxu0 0.0
    %724 = vmatpush2.msra.mxu0 0.0
    %725 = vmatprep.subr.mxu0 0.0
    %726 = vmatpush2.msra.mxu0 0.0
    %727 = vmatprep.subr.mxu0 0.0
    %728 = vmatpush2.msra.mxu0 0.0
    %729 = vmatprep.subr.mxu0 0.0
    %730 = vmatpush2.msra.mxu0 0.0
    %731 = vmatprep.subr.mxu0 0.0
    %732 = vmatpush2.msra.mxu0 0.0
    %733 = vmatprep.subr.mxu0 0.0
    %734 = vmatpush2.msra.mxu0 0.0
    %735 = vmatprep.subr.mxu0 0.0
    %736 = vmatpush2.msra.mxu0 0.0
    %737 = vmatprep.subr.mxu0 0.0
    %738 = vmatpush2.msra.mxu0 0.0
    %739 = vmatprep.subr.mxu0 0.0
    %740 = vmatpush2.msra.mxu0 0.0
    %741 = vmatprep.subr.mxu0 0.0
    %742 = vmatpush2.msra.mxu0 0.0
    %743 = vmatprep.subr.mxu0 0.0
    %744 = vmatpush2.msra.mxu0 0.0
    %745 = vmatprep.subr.mxu0 0.0
    %746 = vmatpush2.msra.mxu0 0.0
    %747 = vmatprep.subr.mxu0 0.0
    %748 = vmatpush2.msra.mxu0 0.0
    %749 = vmatprep.subr.mxu0 0.0
    %750 = vmatpush2.msra.mxu0 0.0
    %751 = vmatprep.mubr.f32.mxu0 0.0
    %752 = vmatmul.mubr.f32.gmra.mxu0 %v330
    %v753 = vpop.f32.mrf.mxu0
    %v754 = vadd.f32 0.0, %v753
    %v755 = vpop.f32.mrf.mxu0
    %v756 = vadd.f32 0.0, %v755
    %757 = vdwg.mxu0
    %758 = vmatprep.subr.mxu0 0.0
    %759 = vmatpush1.msra.mxu0 0.0
    %760 = vmatprep.subr.mxu0 0.0
    %761 = vmatpush1.msra.mxu0 0.0
    %762 = vmatprep.subr.mxu0 0.0
    %763 = vmatpush1.msra.mxu0 0.0
    %764 = vmatprep.subr.mxu0 %v327
    %765 = vmatpush1.msra.mxu0 %v326
    %766 = vmatprep.subr.mxu0 %v313
    %767 = vmatpush1.msra.mxu0 %v312
    %768 = vmatprep.subr.mxu0 %v299
    %769 = vmatpush1.msra.mxu0 %v298
    %770 = vmatprep.subr.mxu0 %v285
    %771 = vmatpush1.msra.mxu0 %v284
    %772 = vmatprep.subr.mxu0 %v271
    %773 = vmatpush1.msra.mxu0 %v270
    %774 = vmatprep.subr.mxu0 %v257
    %775 = vmatpush1.msra.mxu0 %v256
    %776 = vmatprep.subr.mxu0 %v243
    %777 = vmatpush1.msra.mxu0 %v242
    %778 = vmatprep.subr.mxu0 %v229
    %779 = vmatpush1.msra.mxu0 %v228
    %780 = vmatprep.subr.mxu0 %v215
    %781 = vmatpush1.msra.mxu0 %v214
    %782 = vmatprep.subr.mxu0 %v201
    %783 = vmatpush1.msra.mxu0 %v200
    %784 = vmatprep.subr.mxu0 %v187
    %785 = vmatpush1.msra.mxu0 %v186
    %786 = vmatprep.subr.mxu0 %v173
    %787 = vmatpush1.msra.mxu0 %v172
    %788 = vmatprep.subr.mxu0 %v159
    %789 = vmatpush1.msra.mxu0 %v158
    %790 = vmatprep.subr.mxu0 0.0
    %791 = vmatpush2.msra.mxu0 0.0
    %792 = vmatprep.subr.mxu0 0.0
    %793 = vmatpush2.msra.mxu0 0.0
    %794 = vmatprep.subr.mxu0 0.0
    %795 = vmatpush2.msra.mxu0 0.0
    %796 = vmatprep.subr.mxu0 0.0
    %797 = vmatpush2.msra.mxu0 0.0
    %798 = vmatprep.subr.mxu0 0.0
    %799 = vmatpush2.msra.mxu0 0.0
    %800 = vmatprep.subr.mxu0 0.0
    %801 = vmatpush2.msra.mxu0 0.0
    %802 = vmatprep.subr.mxu0 0.0
    %803 = vmatpush2.msra.mxu0 0.0
    %804 = vmatprep.subr.mxu0 0.0
    %805 = vmatpush2.msra.mxu0 0.0
    %806 = vmatprep.subr.mxu0 0.0
    %807 = vmatpush2.msra.mxu0 0.0
    %808 = vmatprep.subr.mxu0 0.0
    %809 = vmatpush2.msra.mxu0 0.0
    %810 = vmatprep.subr.mxu0 0.0
    %811 = vmatpush2.msra.mxu0 0.0
    %812 = vmatprep.subr.mxu0 0.0
    %813 = vmatpush2.msra.mxu0 0.0
    %814 = vmatprep.subr.mxu0 0.0
    %815 = vmatpush2.msra.mxu0 0.0
    %816 = vmatprep.subr.mxu0 0.0
    %817 = vmatpush2.msra.mxu0 0.0
    %818 = vmatprep.subr.mxu0 0.0
    %819 = vmatpush2.msra.mxu0 0.0
    %820 = vmatprep.subr.mxu0 0.0
    %821 = vmatpush2.msra.mxu0 0.0
    %822 = vmatprep.mubr.f32.mxu0 0.0
    %823 = vmatmul.mubr.f32.gmra.mxu0 %v330
    %v824 = vpop.f32.mrf.mxu0
    %v825 = vadd.f32 0.0, %v824
    %v826 = vpop.f32.mrf.mxu0
    %v827 = vadd.f32 0.0, %v826
    %828 = vdwg.mxu0
    %vm829 = vcmask 392192
    %v831 = vsel %vm829, %v60, 0
    %833 = vmatprep.subr.mxu0 0.0
    %834 = vmatpush1.msra.mxu0 0.0
    %835 = vmatprep.subr.mxu0 0.0
    %836 = vmatpush1.msra.mxu0 0.0
    %837 = vmatprep.subr.mxu0 0.0
    %838 = vmatpush1.msra.mxu0 0.0
    %839 = vmatprep.subr.mxu0 0.0
    %840 = vmatpush1.msra.mxu0 0.0
    %841 = vmatprep.subr.mxu0 0.0
    %842 = vmatpush1.msra.mxu0 0.0
    %843 = vmatprep.subr.mxu0 0.0
    %844 = vmatpush1.msra.mxu0 0.0
    %845 = vmatprep.subr.mxu0 0.0
    %846 = vmatpush1.msra.mxu0 0.0
    %847 = vmatprep.subr.mxu0 0.0
    %848 = vmatpush1.msra.mxu0 0.0
    %849 = vmatprep.subr.mxu0 0.0
    %850 = vmatpush1.msra.mxu0 0.0
    %851 = vmatprep.subr.mxu0 0.0
    %852 = vmatpush1.msra.mxu0 0.0
    %853 = vmatprep.subr.mxu0 %v133
    %854 = vmatpush1.msra.mxu0 %v132
    %855 = vmatprep.subr.mxu0 %v119
    %856 = vmatpush1.msra.mxu0 %v118
    %857 = vmatprep.subr.mxu0 %v105
    %858 = vmatpush1.msra.mxu0 %v104
    %859 = vmatprep.subr.mxu0 %v91
    %860 = vmatpush1.msra.mxu0 %v90
    %861 = vmatprep.subr.mxu0 %v77
    %862 = vmatpush1.msra.mxu0 %v76
    %863 = vmatprep.subr.mxu0 %v63
    %864 = vmatpush1.msra.mxu0 %v62
    %865 = vmatprep.subr.mxu0 0.0
    %866 = vmatpush2.msra.mxu0 0.0
    %867 = vmatprep.subr.mxu0 0.0
    %868 = vmatpush2.msra.mxu0 0.0
    %869 = vmatprep.subr.mxu0 0.0
    %870 = vmatpush2.msra.mxu0 0.0
    %871 = vmatprep.subr.mxu0 0.0
    %872 = vmatpush2.msra.mxu0 0.0
    %873 = vmatprep.subr.mxu0 0.0
    %874 = vmatpush2.msra.mxu0 0.0
    %875 = vmatprep.subr.mxu0 0.0
    %876 = vmatpush2.msra.mxu0 0.0
    %877 = vmatprep.subr.mxu0 0.0
    %878 = vmatpush2.msra.mxu0 0.0
    %879 = vmatprep.subr.mxu0 0.0
    %880 = vmatpush2.msra.mxu0 0.0
    %881 = vmatprep.subr.mxu0 0.0
    %882 = vmatpush2.msra.mxu0 0.0
    %883 = vmatprep.subr.mxu0 0.0
    %884 = vmatpush2.msra.mxu0 0.0
    %885 = vmatprep.subr.mxu0 0.0
    %886 = vmatpush2.msra.mxu0 0.0
    %887 = vmatprep.subr.mxu0 0.0
    %888 = vmatpush2.msra.mxu0 0.0
    %889 = vmatprep.subr.mxu0 0.0
    %890 = vmatpush2.msra.mxu0 0.0
    %891 = vmatprep.subr.mxu0 0.0
    %892 = vmatpush2.msra.mxu0 0.0
    %893 = vmatprep.subr.mxu0 0.0
    %894 = vmatpush2.msra.mxu0 0.0
    %895 = vmatprep.subr.mxu0 0.0
    %896 = vmatpush2.msra.mxu0 0.0
    %897 = vmatprep.mubr.f32.mxu0 0.0
    %898 = vmatmul.mubr.f32.gmra.mxu0 %v831
    %v899 = vpop.f32.mrf.mxu0
    %v900 = vadd.f32 %v399, %v899
    %v901 = vpop.f32.mrf.mxu0
    %v902 = vadd.f32 %v401, %v901
    %903 = vdwg.mxu0
    %904 = vmatprep.subr.mxu0 0.0
    %905 = vmatpush1.msra.mxu0 0.0
    %906 = vmatprep.subr.mxu0 0.0
    %907 = vmatpush1.msra.mxu0 0.0
    %908 = vmatprep.subr.mxu0 0.0
    %909 = vmatpush1.msra.mxu0 0.0
    %910 = vmatprep.subr.mxu0 0.0
    %911 = vmatpush1.msra.mxu0 0.0
    %912 = vmatprep.subr.mxu0 0.0
    %913 = vmatpush1.msra.mxu0 0.0
    %914 = vmatprep.subr.mxu0 0.0
    %915 = vmatpush1.msra.mxu0 0.0
    %916 = vmatprep.subr.mxu0 0.0
    %917 = vmatpush1.msra.mxu0 0.0
    %918 = vmatprep.subr.mxu0 0.0
    %919 = vmatpush1.msra.mxu0 0.0
    %920 = vmatprep.subr.mxu0 0.0
    %921 = vmatpush1.msra.mxu0 0.0
    %922 = vmatprep.subr.mxu0 0.0
    %923 = vmatpush1.msra.mxu0 0.0
    %924 = vmatprep.subr.mxu0 %v135
    %925 = vmatpush1.msra.mxu0 %v134
    %926 = vmatprep.subr.mxu0 %v121
    %927 = vmatpush1.msra.mxu0 %v120
    %928 = vmatprep.subr.mxu0 %v107
    %929 = vmatpush1.msra.mxu0 %v106
    %930 = vmatprep.subr.mxu0 %v93
    %931 = vmatpush1.msra.mxu0 %v92
    %932 = vmatprep.subr.mxu0 %v79
    %933 = vmatpush1.msra.mxu0 %v78
    %934 = vmatprep.subr.mxu0 %v65
    %935 = vmatpush1.msra.mxu0 %v64
    %936 = vmatprep.subr.mxu0 0.0
    %937 = vmatpush2.msra.mxu0 0.0
    %938 = vmatprep.subr.mxu0 0.0
    %939 = vmatpush2.msra.mxu0 0.0
    %940 = vmatprep.subr.mxu0 0.0
    %941 = vmatpush2.msra.mxu0 0.0
    %942 = vmatprep.subr.mxu0 0.0
    %943 = vmatpush2.msra.mxu0 0.0
    %944 = vmatprep.subr.mxu0 0.0
    %945 = vmatpush2.msra.mxu0 0.0
    %946 = vmatprep.subr.mxu0 0.0
    %947 = vmatpush2.msra.mxu0 0.0
    %948 = vmatprep.subr.mxu0 0.0
    %949 = vmatpush2.msra.mxu0 0.0
    %950 = vmatprep.subr.mxu0 0.0
    %951 = vmatpush2.msra.mxu0 0.0
    %952 = vmatprep.subr.mxu0 0.0
    %953 = vmatpush2.msra.mxu0 0.0
    %954 = vmatprep.subr.mxu0 0.0
    %955 = vmatpush2.msra.mxu0 0.0
    %956 = vmatprep.subr.mxu0 0.0
    %957 = vmatpush2.msra.mxu0 0.0
    %958 = vmatprep.subr.mxu0 0.0
    %959 = vmatpush2.msra.mxu0 0.0
    %960 = vmatprep.subr.mxu0 0.0
    %961 = vmatpush2.msra.mxu0 0.0
    %962 = vmatprep.subr.mxu0 0.0
    %963 = vmatpush2.msra.mxu0 0.0
    %964 = vmatprep.subr.mxu0 0.0
    %965 = vmatpush2.msra.mxu0 0.0
    %966 = vmatprep.subr.mxu0 0.0
    %967 = vmatpush2.msra.mxu0 0.0
    %968 = vmatprep.mubr.f32.mxu0 0.0
    %969 = vmatmul.mubr.f32.gmra.mxu0 %v831
    %v970 = vpop.f32.mrf.mxu0
    %v971 = vadd.f32 %v470, %v970
    %v972 = vpop.f32.mrf.mxu0
    %v973 = vadd.f32 %v472, %v972
    %974 = vdwg.mxu0
    %975 = vmatprep.subr.mxu0 0.0
    %976 = vmatpush1.msra.mxu0 0.0
    %977 = vmatprep.subr.mxu0 0.0
    %978 = vmatpush1.msra.mxu0 0.0
    %979 = vmatprep.subr.mxu0 0.0
    %980 = vmatpush1.msra.mxu0 0.0
    %981 = vmatprep.subr.mxu0 0.0
    %982 = vmatpush1.msra.mxu0 0.0
    %983 = vmatprep.subr.mxu0 0.0
    %984 = vmatpush1.msra.mxu0 0.0
    %985 = vmatprep.subr.mxu0 0.0
    %986 = vmatpush1.msra.mxu0 0.0
    %987 = vmatprep.subr.mxu0 0.0
    %988 = vmatpush1.msra.mxu0 0.0
    %989 = vmatprep.subr.mxu0 0.0
    %990 = vmatpush1.msra.mxu0 0.0
    %991 = vmatprep.subr.mxu0 0.0
    %992 = vmatpush1.msra.mxu0 0.0
    %993 = vmatprep.subr.mxu0 0.0
    %994 = vmatpush1.msra.mxu0 0.0
    %995 = vmatprep.subr.mxu0 %v137
    %996 = vmatpush1.msra.mxu0 %v136
    %997 = vmatprep.subr.mxu0 %v123
    %998 = vmatpush1.msra.mxu0 %v122
    %999 = vmatprep.subr.mxu0 %v109
    %1000 = vmatpush1.msra.mxu0 %v108
    %1001 = vmatprep.subr.mxu0 %v95
    %1002 = vmatpush1.msra.mxu0 %v94
    %1003 = vmatprep.subr.mxu0 %v81
    %1004 = vmatpush1.msra.mxu0 %v80
    %1005 = vmatprep.subr.mxu0 %v67
    %1006 = vmatpush1.msra.mxu0 %v66
    %1007 = vmatprep.subr.mxu0 0.0
    %1008 = vmatpush2.msra.mxu0 0.0
    %1009 = vmatprep.subr.mxu0 0.0
    %1010 = vmatpush2.msra.mxu0 0.0
    %1011 = vmatprep.subr.mxu0 0.0
    %1012 = vmatpush2.msra.mxu0 0.0
    %1013 = vmatprep.subr.mxu0 0.0
    %1014 = vmatpush2.msra.mxu0 0.0
    %1015 = vmatprep.subr.mxu0 0.0
    %1016 = vmatpush2.msra.mxu0 0.0
    %1017 = vmatprep.subr.mxu0 0.0
    %1018 = vmatpush2.msra.mxu0 0.0
    %1019 = vmatprep.subr.mxu0 0.0
    %1020 = vmatpush2.msra.mxu0 0.0
    %1021 = vmatprep.subr.mxu0 0.0
    %1022 = vmatpush2.msra.mxu0 0.0
    %1023 = vmatprep.subr.mxu0 0.0
    %1024 = vmatpush2.msra.mxu0 0.0
    %1025 = vmatprep.subr.mxu0 0.0
    %1026 = vmatpush2.msra.mxu0 0.0
    %1027 = vmatprep.subr.mxu0 0.0
    %1028 = vmatpush2.msra.mxu0 0.0
    %1029 = vmatprep.subr.mxu0 0.0
    %1030 = vmatpush2.msra.mxu0 0.0
    %1031 = vmatprep.subr.mxu0 0.0
    %1032 = vmatpush2.msra.mxu0 0.0
    %1033 = vmatprep.subr.mxu0 0.0
    %1034 = vmatpush2.msra.mxu0 0.0
    %1035 = vmatprep.subr.mxu0 0.0
    %1036 = vmatpush2.msra.mxu0 0.0
    %1037 = vmatprep.subr.mxu0 0.0
    %1038 = vmatpush2.msra.mxu0 0.0
    %1039 = vmatprep.mubr.f32.mxu0 0.0
    %1040 = vmatmul.mubr.f32.gmra.mxu0 %v831
    %v1041 = vpop.f32.mrf.mxu0
    %v1042 = vadd.f32 %v541, %v1041
    %v1043 = vpop.f32.mrf.mxu0
    %v1044 = vadd.f32 %v543, %v1043
    %1045 = vdwg.mxu0
    %1046 = vmatprep.subr.mxu0 0.0
    %1047 = vmatpush1.msra.mxu0 0.0
    %1048 = vmatprep.subr.mxu0 0.0
    %1049 = vmatpush1.msra.mxu0 0.0
    %1050 = vmatprep.subr.mxu0 0.0
    %1051 = vmatpush1.msra.mxu0 0.0
    %1052 = vmatprep.subr.mxu0 0.0
    %1053 = vmatpush1.msra.mxu0 0.0
    %1054 = vmatprep.subr.mxu0 0.0
    %1055 = vmatpush1.msra.mxu0 0.0
    %1056 = vmatprep.subr.mxu0 0.0
    %1057 = vmatpush1.msra.mxu0 0.0
    %1058 = vmatprep.subr.mxu0 0.0
    %1059 = vmatpush1.msra.mxu0 0.0
    %1060 = vmatprep.subr.mxu0 0.0
    %1061 = vmatpush1.msra.mxu0 0.0
    %1062 = vmatprep.subr.mxu0 0.0
    %1063 = vmatpush1.msra.mxu0 0.0
    %1064 = vmatprep.subr.mxu0 0.0
    %1065 = vmatpush1.msra.mxu0 0.0
    %1066 = vmatprep.subr.mxu0 %v139
    %1067 = vmatpush1.msra.mxu0 %v138
    %1068 = vmatprep.subr.mxu0 %v125
    %1069 = vmatpush1.msra.mxu0 %v124
    %1070 = vmatprep.subr.mxu0 %v111
    %1071 = vmatpush1.msra.mxu0 %v110
    %1072 = vmatprep.subr.mxu0 %v97
    %1073 = vmatpush1.msra.mxu0 %v96
    %1074 = vmatprep.subr.mxu0 %v83
    %1075 = vmatpush1.msra.mxu0 %v82
    %1076 = vmatprep.subr.mxu0 %v69
    %1077 = vmatpush1.msra.mxu0 %v68
    %1078 = vmatprep.subr.mxu0 0.0
    %1079 = vmatpush2.msra.mxu0 0.0
    %1080 = vmatprep.subr.mxu0 0.0
    %1081 = vmatpush2.msra.mxu0 0.0
    %1082 = vmatprep.subr.mxu0 0.0
    %1083 = vmatpush2.msra.mxu0 0.0
    %1084 = vmatprep.subr.mxu0 0.0
    %1085 = vmatpush2.msra.mxu0 0.0
    %1086 = vmatprep.subr.mxu0 0.0
    %1087 = vmatpush2.msra.mxu0 0.0
    %1088 = vmatprep.subr.mxu0 0.0
    %1089 = vmatpush2.msra.mxu0 0.0
    %1090 = vmatprep.subr.mxu0 0.0
    %1091 = vmatpush2.msra.mxu0 0.0
    %1092 = vmatprep.subr.mxu0 0.0
    %1093 = vmatpush2.msra.mxu0 0.0
    %1094 = vmatprep.subr.mxu0 0.0
    %1095 = vmatpush2.msra.mxu0 0.0
    %1096 = vmatprep.subr.mxu0 0.0
    %1097 = vmatpush2.msra.mxu0 0.0
    %1098 = vmatprep.subr.mxu0 0.0
    %1099 = vmatpush2.msra.mxu0 0.0
    %1100 = vmatprep.subr.mxu0 0.0
    %1101 = vmatpush2.msra.mxu0 0.0
    %1102 = vmatprep.subr.mxu0 0.0
    %1103 = vmatpush2.msra.mxu0 0.0
    %1104 = vmatprep.subr.mxu0 0.0
    %1105 = vmatpush2.msra.mxu0 0.0
    %1106 = vmatprep.subr.mxu0 0.0
    %1107 = vmatpush2.msra.mxu0 0.0
    %1108 = vmatprep.subr.mxu0 0.0
    %1109 = vmatpush2.msra.mxu0 0.0
    %1110 = vmatprep.mubr.f32.mxu0 0.0
    %1111 = vmatmul.mubr.f32.gmra.mxu0 %v831
    %v1112 = vpop.f32.mrf.mxu0
    %v1113 = vadd.f32 %v612, %v1112
    %v1114 = vpop.f32.mrf.mxu0
    %v1115 = vadd.f32 %v614, %v1114
    %1116 = vdwg.mxu0
    %1117 = vmatprep.subr.mxu0 0.0
    %1118 = vmatpush1.msra.mxu0 0.0
    %1119 = vmatprep.subr.mxu0 0.0
    %1120 = vmatpush1.msra.mxu0 0.0
    %1121 = vmatprep.subr.mxu0 0.0
    %1122 = vmatpush1.msra.mxu0 0.0
    %1123 = vmatprep.subr.mxu0 0.0
    %1124 = vmatpush1.msra.mxu0 0.0
    %1125 = vmatprep.subr.mxu0 0.0
    %1126 = vmatpush1.msra.mxu0 0.0
    %1127 = vmatprep.subr.mxu0 0.0
    %1128 = vmatpush1.msra.mxu0 0.0
    %1129 = vmatprep.subr.mxu0 0.0
    %1130 = vmatpush1.msra.mxu0 0.0
    %1131 = vmatprep.subr.mxu0 0.0
    %1132 = vmatpush1.msra.mxu0 0.0
    %1133 = vmatprep.subr.mxu0 0.0
    %1134 = vmatpush1.msra.mxu0 0.0
    %1135 = vmatprep.subr.mxu0 0.0
    %1136 = vmatpush1.msra.mxu0 0.0
    %1137 = vmatprep.subr.mxu0 %v141
    %1138 = vmatpush1.msra.mxu0 %v140
    %1139 = vmatprep.subr.mxu0 %v127
    %1140 = vmatpush1.msra.mxu0 %v126
    %1141 = vmatprep.subr.mxu0 %v113
    %1142 = vmatpush1.msra.mxu0 %v112
    %1143 = vmatprep.subr.mxu0 %v99
    %1144 = vmatpush1.msra.mxu0 %v98
    %1145 = vmatprep.subr.mxu0 %v85
    %1146 = vmatpush1.msra.mxu0 %v84
    %1147 = vmatprep.subr.mxu0 %v71
    %1148 = vmatpush1.msra.mxu0 %v70
    %1149 = vmatprep.subr.mxu0 0.0
    %1150 = vmatpush2.msra.mxu0 0.0
    %1151 = vmatprep.subr.mxu0 0.0
    %1152 = vmatpush2.msra.mxu0 0.0
    %1153 = vmatprep.subr.mxu0 0.0
    %1154 = vmatpush2.msra.mxu0 0.0
    %1155 = vmatprep.subr.mxu0 0.0
    %1156 = vmatpush2.msra.mxu0 0.0
    %1157 = vmatprep.subr.mxu0 0.0
    %1158 = vmatpush2.msra.mxu0 0.0
    %1159 = vmatprep.subr.mxu0 0.0
    %1160 = vmatpush2.msra.mxu0 0.0
    %1161 = vmatprep.subr.mxu0 0.0
    %1162 = vmatpush2.msra.mxu0 0.0
    %1163 = vmatprep.subr.mxu0 0.0
    %1164 = vmatpush2.msra.mxu0 0.0
    %1165 = vmatprep.subr.mxu0 0.0
    %1166 = vmatpush2.msra.mxu0 0.0
    %1167 = vmatprep.subr.mxu0 0.0
    %1168 = vmatpush2.msra.mxu0 0.0
    %1169 = vmatprep.subr.mxu0 0.0
    %1170 = vmatpush2.msra.mxu0 0.0
    %1171 = vmatprep.subr.mxu0 0.0
    %1172 = vmatpush2.msra.mxu0 0.0
    %1173 = vmatprep.subr.mxu0 0.0
    %1174 = vmatpush2.msra.mxu0 0.0
    %1175 = vmatprep.subr.mxu0 0.0
    %1176 = vmatpush2.msra.mxu0 0.0
    %1177 = vmatprep.subr.mxu0 0.0
    %1178 = vmatpush2.msra.mxu0 0.0
    %1179 = vmatprep.subr.mxu0 0.0
    %1180 = vmatpush2.msra.mxu0 0.0
    %1181 = vmatprep.mubr.f32.mxu0 0.0
    %1182 = vmatmul.mubr.f32.gmra.mxu0 %v831
    %v1183 = vpop.f32.mrf.mxu0
    %v1184 = vadd.f32 %v683, %v1183
    %v1185 = vpop.f32.mrf.mxu0
    %v1186 = vadd.f32 %v685, %v1185
    %1187 = vdwg.mxu0
    %1188 = vmatprep.subr.mxu0 0.0
    %1189 = vmatpush1.msra.mxu0 0.0
    %1190 = vmatprep.subr.mxu0 0.0
    %1191 = vmatpush1.msra.mxu0 0.0
    %1192 = vmatprep.subr.mxu0 0.0
    %1193 = vmatpush1.msra.mxu0 0.0
    %1194 = vmatprep.subr.mxu0 0.0
    %1195 = vmatpush1.msra.mxu0 0.0
    %1196 = vmatprep.subr.mxu0 0.0
    %1197 = vmatpush1.msra.mxu0 0.0
    %1198 = vmatprep.subr.mxu0 0.0
    %1199 = vmatpush1.msra.mxu0 0.0
    %1200 = vmatprep.subr.mxu0 0.0
    %1201 = vmatpush1.msra.mxu0 0.0
    %1202 = vmatprep.subr.mxu0 0.0
    %1203 = vmatpush1.msra.mxu0 0.0
    %1204 = vmatprep.subr.mxu0 0.0
    %1205 = vmatpush1.msra.mxu0 0.0
    %1206 = vmatprep.subr.mxu0 0.0
    %1207 = vmatpush1.msra.mxu0 0.0
    %1208 = vmatprep.subr.mxu0 %v143
    %1209 = vmatpush1.msra.mxu0 %v142
    %1210 = vmatprep.subr.mxu0 %v129
    %1211 = vmatpush1.msra.mxu0 %v128
    %1212 = vmatprep.subr.mxu0 %v115
    %1213 = vmatpush1.msra.mxu0 %v114
    %1214 = vmatprep.subr.mxu0 %v101
    %1215 = vmatpush1.msra.mxu0 %v100
    %1216 = vmatprep.subr.mxu0 %v87
    %1217 = vmatpush1.msra.mxu0 %v86
    %1218 = vmatprep.subr.mxu0 %v73
    %1219 = vmatpush1.msra.mxu0 %v72
    %1220 = vmatprep.subr.mxu0 0.0
    %1221 = vmatpush2.msra.mxu0 0.0
    %1222 = vmatprep.subr.mxu0 0.0
    %1223 = vmatpush2.msra.mxu0 0.0
    %1224 = vmatprep.subr.mxu0 0.0
    %1225 = vmatpush2.msra.mxu0 0.0
    %1226 = vmatprep.subr.mxu0 0.0
    %1227 = vmatpush2.msra.mxu0 0.0
    %1228 = vmatprep.subr.mxu0 0.0
    %1229 = vmatpush2.msra.mxu0 0.0
    %1230 = vmatprep.subr.mxu0 0.0
    %1231 = vmatpush2.msra.mxu0 0.0
    %1232 = vmatprep.subr.mxu0 0.0
    %1233 = vmatpush2.msra.mxu0 0.0
    %1234 = vmatprep.subr.mxu0 0.0
    %1235 = vmatpush2.msra.mxu0 0.0
    %1236 = vmatprep.subr.mxu0 0.0
    %1237 = vmatpush2.msra.mxu0 0.0
    %1238 = vmatprep.subr.mxu0 0.0
    %1239 = vmatpush2.msra.mxu0 0.0
    %1240 = vmatprep.subr.mxu0 0.0
    %1241 = vmatpush2.msra.mxu0 0.0
    %1242 = vmatprep.subr.mxu0 0.0
    %1243 = vmatpush2.msra.mxu0 0.0
    %1244 = vmatprep.subr.mxu0 0.0
    %1245 = vmatpush2.msra.mxu0 0.0
    %1246 = vmatprep.subr.mxu0 0.0
    %1247 = vmatpush2.msra.mxu0 0.0
    %1248 = vmatprep.subr.mxu0 0.0
    %1249 = vmatpush2.msra.mxu0 0.0
    %1250 = vmatprep.subr.mxu0 0.0
    %1251 = vmatpush2.msra.mxu0 0.0
    %1252 = vmatprep.mubr.f32.mxu0 0.0
    %1253 = vmatmul.mubr.f32.gmra.mxu0 %v831
    %v1254 = vpop.f32.mrf.mxu0
    %v1255 = vadd.f32 %v754, %v1254
    %v1256 = vpop.f32.mrf.mxu0
    %v1257 = vadd.f32 %v756, %v1256
    %1258 = vdwg.mxu0
    %1259 = vmatprep.subr.mxu0 0.0
    %1260 = vmatpush1.msra.mxu0 0.0
    %1261 = vmatprep.subr.mxu0 0.0
    %1262 = vmatpush1.msra.mxu0 0.0
    %1263 = vmatprep.subr.mxu0 0.0
    %1264 = vmatpush1.msra.mxu0 0.0
    %1265 = vmatprep.subr.mxu0 0.0
    %1266 = vmatpush1.msra.mxu0 0.0
    %1267 = vmatprep.subr.mxu0 0.0
    %1268 = vmatpush1.msra.mxu0 0.0
    %1269 = vmatprep.subr.mxu0 0.0
    %1270 = vmatpush1.msra.mxu0 0.0
    %1271 = vmatprep.subr.mxu0 0.0
    %1272 = vmatpush1.msra.mxu0 0.0
    %1273 = vmatprep.subr.mxu0 0.0
    %1274 = vmatpush1.msra.mxu0 0.0
    %1275 = vmatprep.subr.mxu0 0.0
    %1276 = vmatpush1.msra.mxu0 0.0
    %1277 = vmatprep.subr.mxu0 0.0
    %1278 = vmatpush1.msra.mxu0 0.0
    %1279 = vmatprep.subr.mxu0 %v145
    %1280 = vmatpush1.msra.mxu0 %v144
    %1281 = vmatprep.subr.mxu0 %v131
    %1282 = vmatpush1.msra.mxu0 %v130
    %1283 = vmatprep.subr.mxu0 %v117
    %1284 = vmatpush1.msra.mxu0 %v116
    %1285 = vmatprep.subr.mxu0 %v103
    %1286 = vmatpush1.msra.mxu0 %v102
    %1287 = vmatprep.subr.mxu0 %v89
    %1288 = vmatpush1.msra.mxu0 %v88
    %1289 = vmatprep.subr.mxu0 %v75
    %1290 = vmatpush1.msra.mxu0 %v74
    %1291 = vmatprep.subr.mxu0 0.0
    %1292 = vmatpush2.msra.mxu0 0.0
    %1293 = vmatprep.subr.mxu0 0.0
    %1294 = vmatpush2.msra.mxu0 0.0
    %1295 = vmatprep.subr.mxu0 0.0
    %1296 = vmatpush2.msra.mxu0 0.0
    %1297 = vmatprep.subr.mxu0 0.0
    %1298 = vmatpush2.msra.mxu0 0.0
    %1299 = vmatprep.subr.mxu0 0.0
    %1300 = vmatpush2.msra.mxu0 0.0
    %1301 = vmatprep.subr.mxu0 0.0
    %1302 = vmatpush2.msra.mxu0 0.0
    %1303 = vmatprep.subr.mxu0 0.0
    %1304 = vmatpush2.msra.mxu0 0.0
    %1305 = vmatprep.subr.mxu0 0.0
    %1306 = vmatpush2.msra.mxu0 0.0
    %1307 = vmatprep.subr.mxu0 0.0
    %1308 = vmatpush2.msra.mxu0 0.0
    %1309 = vmatprep.subr.mxu0 0.0
    %1310 = vmatpush2.msra.mxu0 0.0
    %1311 = vmatprep.subr.mxu0 0.0
    %1312 = vmatpush2.msra.mxu0 0.0
    %1313 = vmatprep.subr.mxu0 0.0
    %1314 = vmatpush2.msra.mxu0 0.0
    %1315 = vmatprep.subr.mxu0 0.0
    %1316 = vmatpush2.msra.mxu0 0.0
    %1317 = vmatprep.subr.mxu0 0.0
    %1318 = vmatpush2.msra.mxu0 0.0
    %1319 = vmatprep.subr.mxu0 0.0
    %1320 = vmatpush2.msra.mxu0 0.0
    %1321 = vmatprep.subr.mxu0 0.0
    %1322 = vmatpush2.msra.mxu0 0.0
    %1323 = vmatprep.mubr.f32.mxu0 0.0
    %1324 = vmatmul.mubr.f32.gmra.mxu0 %v831
    %v1325 = vpop.f32.mrf.mxu0
    %v1326 = vadd.f32 %v825, %v1325
    %v1327 = vpop.f32.mrf.mxu0
    %v1328 = vadd.f32 %v827, %v1327
    %1329 = vdwg.mxu0
    %v1343 = vcombine.low %v900, %v902
    %v1344 = vcombine.low %v971, %v973
    %v1345 = vcombine.low %v1042, %v1044
    %v1346 = vcombine.low %v1113, %v1115
    %v1348 = vunpack.c.l.s4 1966171168
    %v1349 = vunpack.c.0.s8 %v1348
    %v1350 = vlaneseq
    %v1351 = vshrl.u32 %v1350, 7
    %v1352 = vsub.s32 %v1349, %v1351
    %v1353 = vrot.slane %v1343, %v1352
    %v1355 = vunpack.c.l.s4 1966171168
    %v1356 = vunpack.c.0.s8 %v1355
    %v1357 = vlaneseq
    %v1358 = vshrl.u32 %v1357, 7
    %v1359 = vsub.s32 %v1356, %v1358
    %v1360 = vrot.slane %v1344, %v1359
    %v1362 = vunpack.c.l.s4 1966171168
    %v1363 = vunpack.c.0.s8 %v1362
    %v1364 = vlaneseq
    %v1365 = vshrl.u32 %v1364, 7
    %v1366 = vsub.s32 %v1363, %v1365
    %v1367 = vrot.slane %v1345, %v1366
    %v1369 = vunpack.c.l.s4 1966171168
    %v1370 = vunpack.c.0.s8 %v1369
    %v1371 = vlaneseq
    %v1372 = vshrl.u32 %v1371, 7
    %v1373 = vsub.s32 %v1370, %v1372
    %v1374 = vrot.slane %v1346, %v1373
    %v1375 = vcombine.low %v1353, %v1360
    %v1376 = vcombine.low %v1367, %v1374
    %v1378 = vunpack.c.l.s4 1966171168
    %v1379 = vunpack.c.0.s8 %v1378
    %v1380 = vlaneseq
    %v1381 = vshrl.u32 %v1380, 7
    %v1382 = vsub.s32 %v1379, %v1381
    %v1383 = vrot.slane %v1375, %v1382
    %v1385 = vunpack.c.l.s4 1966171168
    %v1386 = vunpack.c.0.s8 %v1385
    %v1387 = vlaneseq
    %v1388 = vshrl.u32 %v1387, 7
    %v1389 = vsub.s32 %v1386, %v1388
    %v1390 = vrot.slane %v1376, %v1389
    %v1391 = vcombine.low %v1383, %v1390
    %v1392 = vcombine.low %v1184, %v1186
    %v1393 = vcombine.low %v1255, %v1257
    %v1395 = vunpack.c.l.s4 1966171168
    %v1396 = vunpack.c.0.s8 %v1395
    %v1397 = vlaneseq
    %v1398 = vshrl.u32 %v1397, 7
    %v1399 = vsub.s32 %v1396, %v1398
    %v1400 = vrot.slane %v1392, %v1399
    %v1402 = vunpack.c.l.s4 1966171168
    %v1403 = vunpack.c.0.s8 %v1402
    %v1404 = vlaneseq
    %v1405 = vshrl.u32 %v1404, 7
    %v1406 = vsub.s32 %v1403, %v1405
    %v1407 = vrot.slane %v1393, %v1406
    %v1409 = vunpack.c.l.s4 1966171168
    %v1410 = vunpack.c.0.s8 %v1409
    %v1411 = vlaneseq
    %v1412 = vshrl.u32 %v1411, 7
    %v1413 = vsub.s32 %v1410, %v1412
    %v1414 = vrot.slane %v1326, %v1413
    %v1415 = vcombine.low %v1400, %v1407
    %v1417 = vunpack.c.l.s4 1966171168
    %v1418 = vunpack.c.0.s8 %v1417
    %v1419 = vlaneseq
    %v1420 = vshrl.u32 %v1419, 7
    %v1421 = vsub.s32 %v1418, %v1420
    %v1422 = vrot.slane %v1415, %v1421
    %v1424 = vunpack.c.l.s4 1966171168
    %v1425 = vunpack.c.0.s8 %v1424
    %v1426 = vlaneseq
    %v1427 = vshrl.u32 %v1426, 7
    %v1428 = vsub.s32 %v1425, %v1427
    %v1429 = vrot.slane %v1414, %v1428
    %v1430 = vcombine.low %v1422, %v1429
    %1433 = vst [vmem:[#allocation9] sm:$0xff] %v1391
    %v1434 = vlaneseq
    %vm1435 = vcmp.ge.s32.totalorder %v1434, 0
    %vm1436 = vcmp.lt.s32.totalorder %v1434, 640
    %vm1437 = vmand %vm1435, %vm1436
    %1438 = vst.msk [vmem:[#allocation9 + $0x8] sm:$0x1f] %vm1437, %v1430
    %vm1439 = vcmask 385024
    %1440 = vst.msk [vmem:[#allocation2] sm:$0x1] %vm1439, %v1328
    // Predicated region
    $region30: #{tpu_custom_call.1} parent=1 // pred_check
      _
    $region31: #{tpu_custom_call.1} parent=1 // pred_check_branch
      %1442 = sbr.rel (0) target = $region33
    $region32: #{tpu_custom_call.1} parent=1 // pred_region
      %s1444 = ssub.s32 208, 208
      %1445 = vsyncadd [#allocation5], %s1444
      %s1447 = sshll.u32 [#allocation9], 4
      %s1448 = int_to_ptr.vmem [resolvable:$true] %s1447
      %1450 = dma.vmem_to_hbm [thread:$0]  %s1448, 208, %s3, [#allocation5]
    $region33: #{tpu_custom_call.1} parent=1 // pred_fallthru
      _
    // Predicated region
    $region34: #{tpu_custom_call.1} parent=1 // pred_check
      _
    $region35: #{tpu_custom_call.1} parent=1 // pred_check_branch
      %1452 = sbr.rel (0) target = $region37
    $region36: #{tpu_custom_call.1} parent=1 // pred_region
      %1453 = dma.done [#allocation5], 208
    $region37: #{tpu_custom_call.1} parent=1 // pred_fallthru
      _
    %1454 = vsyncpa [#allocation4], 1
    %1455 = vsyncpa [#allocation7], 1
    %1456 = vsyncpa [#allocation5], 1

</llo_original>
